<compile_context>
chip_gen: v5e
topology: v5e:2x2
jax: 0.10.0
libtpu: 0.0.40
codegen_flags: <defaults>
</compile_context>

<pallas_src>
import functools
import math

import jax
import jax.numpy as jnp
from jax import lax
from jax.experimental import pallas as pl
from jax.experimental.pallas import tpu as pltpu

# ---------------- model config (small, TPU-friendly) ----------------
BATCH = 2
SEQ = 8
DIM = 128            # dim_num (PyTorch default 512; 128 keeps it small + lane aligned)
HEAD_NUM = 8         # MultiHeadAttention default
HEAD_DIM = DIM // HEAD_NUM
HIDDEN = DIM * 4     # FeedForward hidden size


def _encoder_kernel(q_ref, k_ref, v_ref,
                    wq_ref, bq_ref, wk_ref, bk_ref, wv_ref, bv_ref,
                    w1_ref, b1_ref, w2_ref, b2_ref,
                    out_ref,
                    *, batch, seq, dim, head_num, head_dim):
    f32 = jnp.float32
    bf16 = jnp.bfloat16

    q = q_ref[...]                        # (B*S, D) f32 (kept f32 for the residual)
    qb = q.astype(bf16)
    kb = k_ref[...].astype(bf16)
    vb = v_ref[...].astype(bf16)

    # ---- Q/K/V projections: bf16 MXU operands, f32 accumulation ----
    qp = jnp.dot(qb, wq_ref[...], preferred_element_type=f32) + bq_ref[...]
    kp = jnp.dot(kb, wk_ref[...], preferred_element_type=f32) + bk_ref[...]
    vp = jnp.dot(vb, wv_ref[...], preferred_element_type=f32) + bv_ref[...]

    # Fold the 1/sqrt(d_k) attention scale into Q once (one VPU pass over (B*S, D)).
    qp = qp * (1.0 / math.sqrt(float(head_dim)))

    # ---- stage activations head-major: (B*H, S, hd) ----
    def gather_heads(x):
        blocks = []
        for b in range(batch):
            r0 = b * seq
            for h in range(head_num):
                c0 = h * head_dim
                blocks.append(x[r0:r0 + seq, c0:c0 + head_dim])
        return jnp.stack(blocks, axis=0)          # (B*H, S, hd)

    qh = gather_heads(qp)
    kh = gather_heads(kp)
    vh = gather_heads(vp)

    # ---- scaled dot-product attention, batched over (batch, head) ----
    # scores: (B*H, S, S); contraction orientation handles K^T (no vxpose).
    s = jnp.einsum("gqd,gkd->gqk", qh, kh, preferred_element_type=f32)
    s = s - jnp.max(s, axis=-1, keepdims=True)
    e = jnp.exp(s)
    p = e * pl.reciprocal(jnp.sum(e, axis=-1, keepdims=True), approx=True)
    o = jnp.einsum("gqk,gkd->gqd", p, vh, preferred_element_type=f32)    # (B*H, S, hd)

    # ---- merge heads back to (B*S, D): mh[b*S+s, h*hd+e] = o[b*H+h, s, e] ----
    rows = [jnp.concatenate([o[b * head_num + h] for h in range(head_num)], axis=-1)
            for b in range(batch)]
    mh = jnp.concatenate(rows, axis=0)            # (B*S, D)

    # ---- AddLayerNorm: residual + (x - mean) / std  (unbiased std, no eps) ----
    def add_layer_norm(x, residual):
        mean = jnp.mean(x, axis=-1, keepdims=True)
        centered = x - mean
        var = jnp.sum(centered * centered, axis=-1, keepdims=True) * (1.0 / (dim - 1))
        return residual + centered * lax.rsqrt(var)

    r1 = add_layer_norm(mh, q)

    # ---- FeedForward: layer2(relu(layer1(x))), bf16 operands / f32 accum ----
    h1 = jnp.dot(r1.astype(bf16), w1_ref[...], preferred_element_type=f32) + b1_ref[...]
    h1 = jnp.maximum(h1, 0.0)
    ff = jnp.dot(h1.astype(bf16), w2_ref[...], preferred_element_type=f32) + b2_ref[...]

    out_ref[...] = add_layer_norm(ff, r1)


def encoder_pallas(q, k, v, params):
    B, S, D = q.shape
    BS = B * S
    H4 = 4 * D
    bf16 = jnp.bfloat16

    # Flatten batch into rows so the projections / FFN run at M = B*S.
    q2 = q.reshape(BS, D)
    k2 = k.reshape(BS, D)
    v2 = v.reshape(BS, D)

    kernel = functools.partial(_encoder_kernel, batch=B, seq=S, dim=D,
                               head_num=HEAD_NUM, head_dim=D // HEAD_NUM)

    act_spec = pl.BlockSpec((BS, D), lambda i: (0, 0))
    full = lambda shape: pl.BlockSpec(shape, lambda i: (0,) * len(shape))

    in_specs = [
        act_spec, act_spec, act_spec,             # q, k, v   (B*S, D) f32
        full((D, D)), full((1, D)),               # wq (bf16), bq (f32)
        full((D, D)), full((1, D)),               # wk, bk
        full((D, D)), full((1, D)),               # wv, bv
        full((D, H4)), full((1, H4)),             # w1, b1
        full((H4, D)), full((1, D)),              # w2, b2
    ]

    out2 = pl.pallas_call(
        kernel,
        out_shape=jax.ShapeDtypeStruct((BS, D), jnp.float32),
        grid_spec=pltpu.PrefetchScalarGridSpec(
            num_scalar_prefetch=0,
            grid=(1,),                            # single invocation (batch collapsed)
            in_specs=in_specs,
            out_specs=act_spec,
        ),
        compiler_params=pltpu.CompilerParams(
            dimension_semantics=("arbitrary",),
        ),
    )(q2, k2, v2,
      params["wq"].astype(bf16), params["bq"],
      params["wk"].astype(bf16), params["bk"],
      params["wv"].astype(bf16), params["bv"],
      params["w1"].astype(bf16), params["b1"],
      params["w2"].astype(bf16), params["b2"])

    return out2.reshape(B, S, D)


# ---------------- pure-JAX f32 reference (mirrors PyTorch semantics) ---------
def encoder_ref(q, k, v, params):
    def linear(x, w, b):
        return x @ w + b[0]

    B, S, D = q.shape
    hd = D // HEAD_NUM
    qp = linear(q, params["wq"], params["bq"]).reshape(B, S, HEAD_NUM, hd).transpose(0, 2, 1, 3)
    kp = linear(k, params["wk"], params["bk"]).reshape(B, S, HEAD_NUM, hd).transpose(0, 2, 1, 3)
    vp = linear(v, params["wv"], params["bv"]).reshape(B, S, HEAD_NUM, hd).transpose(0, 2, 1, 3)
    s = jnp.einsum("bhsd,bhtd->bhst", qp, kp) / math.sqrt(hd)
    p = jax.nn.softmax(s, axis=-1)
    attn = jnp.einsum("bhst,bhtd->bhsd", p, vp)
    mh = attn.transpose(0, 2, 1, 3).reshape(B, S, D)

    def add_ln(x, residual):
        mean = jnp.mean(x, axis=-1, keepdims=True)
        std = jnp.sqrt(jnp.sum((x - mean) ** 2, axis=-1, keepdims=True) / (D - 1))
        return residual + (x - mean) / std

    r1 = add_ln(mh, q)
    ff = linear(jnp.maximum(linear(r1, params["w1"], params["b1"]), 0.0),
                params["w2"], params["b2"])
    return add_ln(ff, r1)


def init_params(key, dim):
    ks = jax.random.split(key, 12)

    def lin(kw, kb, fan_in, fan_out):
        bound = 1.0 / math.sqrt(fan_in)
        w = jax.random.uniform(kw, (fan_in, fan_out), jnp.float32, -bound, bound)
        b = jax.random.uniform(kb, (1, fan_out), jnp.float32, -bound, bound)
        return w, b

    wq, bq = lin(ks[0], ks[1], dim, dim)
    wk, bk = lin(ks[2], ks[3], dim, dim)
    wv, bv = lin(ks[4], ks[5], dim, dim)
    w1, b1 = lin(ks[6], ks[7], dim, 4 * dim)
    w2, b2 = lin(ks[8], ks[9], 4 * dim, dim)
    return dict(wq=wq, bq=bq, wk=wk, bk=bk, wv=wv, bv=bv,
                w1=w1, b1=b1, w2=w2, b2=b2)


if __name__ == "__main__":
    key = jax.random.PRNGKey(0)
    kq, kk, kv, kp = jax.random.split(key, 4)
    q = jax.random.normal(kq, (BATCH, SEQ, DIM), jnp.float32)
    k = jax.random.normal(kk, (BATCH, SEQ, DIM), jnp.float32)
    v = jax.random.normal(kv, (BATCH, SEQ, DIM), jnp.float32)
    params = init_params(kp, DIM)

    out = encoder_pallas(q, k, v, params)
    out = jax.block_until_ready(out)

    ref = jax.block_until_ready(encoder_ref(q, k, v, params))
    # bf16 MXU operands vs. the f32 reference -> allow a slightly wider (2e-2)
    # tolerance than the pure-f32 version used.
    if out.shape == (BATCH, SEQ, DIM) and bool(
        jnp.allclose(out, ref, rtol=2e-2, atol=2e-2)
    ):
        print("KERNEL_OK")
    else:
        print("KERNEL_MISMATCH", float(jnp.max(jnp.abs(out - ref))))
</pallas_src>

<mosaic_0001>
module attributes {stable_mosaic.version = 11 : i64} {
  func.func @_encoder_kernel(%arg0: i32, %arg1: memref<16x128xf32, #tpu.memory_space<vmem>>, %arg2: memref<16x128xf32, #tpu.memory_space<vmem>>, %arg3: memref<16x128xf32, #tpu.memory_space<vmem>>, %arg4: memref<128x128xbf16, #tpu.memory_space<vmem>>, %arg5: memref<1x128xf32, #tpu.memory_space<vmem>>, %arg6: memref<128x128xbf16, #tpu.memory_space<vmem>>, %arg7: memref<1x128xf32, #tpu.memory_space<vmem>>, %arg8: memref<128x128xbf16, #tpu.memory_space<vmem>>, %arg9: memref<1x128xf32, #tpu.memory_space<vmem>>, %arg10: memref<128x512xbf16, #tpu.memory_space<vmem>>, %arg11: memref<1x512xf32, #tpu.memory_space<vmem>>, %arg12: memref<512x128xbf16, #tpu.memory_space<vmem>>, %arg13: memref<1x128xf32, #tpu.memory_space<vmem>>, %arg14: memref<16x128xf32, #tpu.memory_space<vmem>>) attributes {dimension_semantics = [#tpu.dimension_semantics<arbitrary>], iteration_bounds = array<i64: 1>, scalar_prefetch = 0 : i64, scratch_operands = 0 : i64, tpu.core_type = #tpu.core_type<tc>, window_params = [{pipeline_mode = #tpu.pipeline_mode<synchronous>, transform_indices = @transform_0, window_bounds = array<i64: 16, 128>}, {pipeline_mode = #tpu.pipeline_mode<synchronous>, transform_indices = @transform_1, window_bounds = array<i64: 16, 128>}, {pipeline_mode = #tpu.pipeline_mode<synchronous>, transform_indices = @transform_2, window_bounds = array<i64: 16, 128>}, {pipeline_mode = #tpu.pipeline_mode<synchronous>, transform_indices = @transform_3, window_bounds = array<i64: 128, 128>}, {pipeline_mode = #tpu.pipeline_mode<synchronous>, transform_indices = @transform_4, window_bounds = array<i64: 1, 128>}, {pipeline_mode = #tpu.pipeline_mode<synchronous>, transform_indices = @transform_5, window_bounds = array<i64: 128, 128>}, {pipeline_mode = #tpu.pipeline_mode<synchronous>, transform_indices = @transform_6, window_bounds = array<i64: 1, 128>}, {pipeline_mode = #tpu.pipeline_mode<synchronous>, transform_indices = @transform_7, window_bounds = array<i64: 128, 128>}, {pipeline_mode = #tpu.pipeline_mode<synchronous>, transform_indices = @transform_8, window_bounds = array<i64: 1, 128>}, {pipeline_mode = #tpu.pipeline_mode<synchronous>, transform_indices = @transform_9, window_bounds = array<i64: 128, 512>}, {pipeline_mode = #tpu.pipeline_mode<synchronous>, transform_indices = @transform_10, window_bounds = array<i64: 1, 512>}, {pipeline_mode = #tpu.pipeline_mode<synchronous>, transform_indices = @transform_11, window_bounds = array<i64: 512, 128>}, {pipeline_mode = #tpu.pipeline_mode<synchronous>, transform_indices = @transform_12, window_bounds = array<i64: 1, 128>}, {pipeline_mode = #tpu.pipeline_mode<synchronous>, transform_indices = @transform_13, window_bounds = array<i64: 16, 128>}]} {
    %c0 = arith.constant 0 : index
    %c0_0 = arith.constant 0 : index
    %0 = vector.load %arg1[%c0, %c0_0] : memref<16x128xf32, #tpu.memory_space<vmem>>, vector<16x128xf32>
    %1 = arith.truncf %0 : vector<16x128xf32> to vector<16x128xbf16>
    %c0_1 = arith.constant 0 : index
    %c0_2 = arith.constant 0 : index
    %2 = vector.load %arg2[%c0_1, %c0_2] : memref<16x128xf32, #tpu.memory_space<vmem>>, vector<16x128xf32>
    %3 = arith.truncf %2 : vector<16x128xf32> to vector<16x128xbf16>
    %c0_3 = arith.constant 0 : index
    %c0_4 = arith.constant 0 : index
    %4 = vector.load %arg3[%c0_3, %c0_4] : memref<16x128xf32, #tpu.memory_space<vmem>>, vector<16x128xf32>
    %5 = arith.truncf %4 : vector<16x128xf32> to vector<16x128xbf16>
    %c0_5 = arith.constant 0 : index
    %c0_6 = arith.constant 0 : index
    %6 = vector.load %arg4[%c0_5, %c0_6] : memref<128x128xbf16, #tpu.memory_space<vmem>>, vector<128x128xbf16>
    %cst = arith.constant dense<0.000000e+00> : vector<16x128xf32>
    %7 = tpu.matmul %1, %6, %cst {dimension_numbers = #tpu.dot_dimension_numbers<[1], [0], [0], [1], [0, 0, 1, 1], [], []>} : vector<16x128xbf16>, vector<128x128xbf16>, vector<16x128xf32> -> vector<16x128xf32>
    %c0_7 = arith.constant 0 : index
    %c0_8 = arith.constant 0 : index
    %8 = vector.load %arg5[%c0_7, %c0_8] : memref<1x128xf32, #tpu.memory_space<vmem>>, vector<1x128xf32>
    %9 = vector.broadcast %8 : vector<1x128xf32> to vector<16x128xf32>
    %10 = arith.addf %7, %9 : vector<16x128xf32>
    %c0_9 = arith.constant 0 : index
    %c0_10 = arith.constant 0 : index
    %11 = vector.load %arg6[%c0_9, %c0_10] : memref<128x128xbf16, #tpu.memory_space<vmem>>, vector<128x128xbf16>
    %cst_11 = arith.constant dense<0.000000e+00> : vector<16x128xf32>
    %12 = tpu.matmul %3, %11, %cst_11 {dimension_numbers = #tpu.dot_dimension_numbers<[1], [0], [0], [1], [0, 0, 1, 1], [], []>} : vector<16x128xbf16>, vector<128x128xbf16>, vector<16x128xf32> -> vector<16x128xf32>
    %c0_12 = arith.constant 0 : index
    %c0_13 = arith.constant 0 : index
    %13 = vector.load %arg7[%c0_12, %c0_13] : memref<1x128xf32, #tpu.memory_space<vmem>>, vector<1x128xf32>
    %14 = vector.broadcast %13 : vector<1x128xf32> to vector<16x128xf32>
    %15 = arith.addf %12, %14 : vector<16x128xf32>
    %c0_14 = arith.constant 0 : index
    %c0_15 = arith.constant 0 : index
    %16 = vector.load %arg8[%c0_14, %c0_15] : memref<128x128xbf16, #tpu.memory_space<vmem>>, vector<128x128xbf16>
    %cst_16 = arith.constant dense<0.000000e+00> : vector<16x128xf32>
    %17 = tpu.matmul %5, %16, %cst_16 {dimension_numbers = #tpu.dot_dimension_numbers<[1], [0], [0], [1], [0, 0, 1, 1], [], []>} : vector<16x128xbf16>, vector<128x128xbf16>, vector<16x128xf32> -> vector<16x128xf32>
    %c0_17 = arith.constant 0 : index
    %c0_18 = arith.constant 0 : index
    %18 = vector.load %arg9[%c0_17, %c0_18] : memref<1x128xf32, #tpu.memory_space<vmem>>, vector<1x128xf32>
    %19 = vector.broadcast %18 : vector<1x128xf32> to vector<16x128xf32>
    %20 = arith.addf %17, %19 : vector<16x128xf32>
    %cst_19 = arith.constant 2.500000e-01 : f32
    %21 = vector.broadcast %cst_19 : f32 to vector<16x128xf32>
    %22 = arith.mulf %10, %21 : vector<16x128xf32>
    %23 = vector.extract_strided_slice %22 {offsets = [0, 0], sizes = [8, 16], strides = [1, 1]} : vector<16x128xf32> to vector<8x16xf32>
    %24 = vector.extract_strided_slice %22 {offsets = [0, 16], sizes = [8, 16], strides = [1, 1]} : vector<16x128xf32> to vector<8x16xf32>
    %25 = vector.extract_strided_slice %22 {offsets = [0, 32], sizes = [8, 16], strides = [1, 1]} : vector<16x128xf32> to vector<8x16xf32>
    %26 = vector.extract_strided_slice %22 {offsets = [0, 48], sizes = [8, 16], strides = [1, 1]} : vector<16x128xf32> to vector<8x16xf32>
    %27 = vector.extract_strided_slice %22 {offsets = [0, 64], sizes = [8, 16], strides = [1, 1]} : vector<16x128xf32> to vector<8x16xf32>
    %28 = vector.extract_strided_slice %22 {offsets = [0, 80], sizes = [8, 16], strides = [1, 1]} : vector<16x128xf32> to vector<8x16xf32>
    %29 = vector.extract_strided_slice %22 {offsets = [0, 96], sizes = [8, 16], strides = [1, 1]} : vector<16x128xf32> to vector<8x16xf32>
    %30 = vector.extract_strided_slice %22 {offsets = [0, 112], sizes = [8, 16], strides = [1, 1]} : vector<16x128xf32> to vector<8x16xf32>
    %31 = vector.extract_strided_slice %22 {offsets = [8, 0], sizes = [8, 16], strides = [1, 1]} : vector<16x128xf32> to vector<8x16xf32>
    %32 = vector.extract_strided_slice %22 {offsets = [8, 16], sizes = [8, 16], strides = [1, 1]} : vector<16x128xf32> to vector<8x16xf32>
    %33 = vector.extract_strided_slice %22 {offsets = [8, 32], sizes = [8, 16], strides = [1, 1]} : vector<16x128xf32> to vector<8x16xf32>
    %34 = vector.extract_strided_slice %22 {offsets = [8, 48], sizes = [8, 16], strides = [1, 1]} : vector<16x128xf32> to vector<8x16xf32>
    %35 = vector.extract_strided_slice %22 {offsets = [8, 64], sizes = [8, 16], strides = [1, 1]} : vector<16x128xf32> to vector<8x16xf32>
    %36 = vector.extract_strided_slice %22 {offsets = [8, 80], sizes = [8, 16], strides = [1, 1]} : vector<16x128xf32> to vector<8x16xf32>
    %37 = vector.extract_strided_slice %22 {offsets = [8, 96], sizes = [8, 16], strides = [1, 1]} : vector<16x128xf32> to vector<8x16xf32>
    %38 = vector.extract_strided_slice %22 {offsets = [8, 112], sizes = [8, 16], strides = [1, 1]} : vector<16x128xf32> to vector<8x16xf32>
    %39 = vector.shape_cast %23 : vector<8x16xf32> to vector<1x8x16xf32>
    %40 = vector.shape_cast %24 : vector<8x16xf32> to vector<1x8x16xf32>
    %41 = vector.shape_cast %25 : vector<8x16xf32> to vector<1x8x16xf32>
    %42 = vector.shape_cast %26 : vector<8x16xf32> to vector<1x8x16xf32>
    %43 = vector.shape_cast %27 : vector<8x16xf32> to vector<1x8x16xf32>
    %44 = vector.shape_cast %28 : vector<8x16xf32> to vector<1x8x16xf32>
    %45 = vector.shape_cast %29 : vector<8x16xf32> to vector<1x8x16xf32>
    %46 = vector.shape_cast %30 : vector<8x16xf32> to vector<1x8x16xf32>
    %47 = vector.shape_cast %31 : vector<8x16xf32> to vector<1x8x16xf32>
    %48 = vector.shape_cast %32 : vector<8x16xf32> to vector<1x8x16xf32>
    %49 = vector.shape_cast %33 : vector<8x16xf32> to vector<1x8x16xf32>
    %50 = vector.shape_cast %34 : vector<8x16xf32> to vector<1x8x16xf32>
    %51 = vector.shape_cast %35 : vector<8x16xf32> to vector<1x8x16xf32>
    %52 = vector.shape_cast %36 : vector<8x16xf32> to vector<1x8x16xf32>
    %53 = vector.shape_cast %37 : vector<8x16xf32> to vector<1x8x16xf32>
    %54 = vector.shape_cast %38 : vector<8x16xf32> to vector<1x8x16xf32>
    %55 = tpu.concatenate %39, %40, %41, %42, %43, %44, %45, %46, %47, %48, %49, %50, %51, %52, %53, %54 in 0 : vector<1x8x16xf32>, vector<1x8x16xf32>, vector<1x8x16xf32>, vector<1x8x16xf32>, vector<1x8x16xf32>, vector<1x8x16xf32>, vector<1x8x16xf32>, vector<1x8x16xf32>, vector<1x8x16xf32>, vector<1x8x16xf32>, vector<1x8x16xf32>, vector<1x8x16xf32>, vector<1x8x16xf32>, vector<1x8x16xf32>, vector<1x8x16xf32>, vector<1x8x16xf32> -> vector<16x8x16xf32>
    %56 = vector.extract_strided_slice %15 {offsets = [0, 0], sizes = [8, 16], strides = [1, 1]} : vector<16x128xf32> to vector<8x16xf32>
    %57 = vector.extract_strided_slice %15 {offsets = [0, 16], sizes = [8, 16], strides = [1, 1]} : vector<16x128xf32> to vector<8x16xf32>
    %58 = vector.extract_strided_slice %15 {offsets = [0, 32], sizes = [8, 16], strides = [1, 1]} : vector<16x128xf32> to vector<8x16xf32>
    %59 = vector.extract_strided_slice %15 {offsets = [0, 48], sizes = [8, 16], strides = [1, 1]} : vector<16x128xf32> to vector<8x16xf32>
    %60 = vector.extract_strided_slice %15 {offsets = [0, 64], sizes = [8, 16], strides = [1, 1]} : vector<16x128xf32> to vector<8x16xf32>
    %61 = vector.extract_strided_slice %15 {offsets = [0, 80], sizes = [8, 16], strides = [1, 1]} : vector<16x128xf32> to vector<8x16xf32>
    %62 = vector.extract_strided_slice %15 {offsets = [0, 96], sizes = [8, 16], strides = [1, 1]} : vector<16x128xf32> to vector<8x16xf32>
    %63 = vector.extract_strided_slice %15 {offsets = [0, 112], sizes = [8, 16], strides = [1, 1]} : vector<16x128xf32> to vector<8x16xf32>
    %64 = vector.extract_strided_slice %15 {offsets = [8, 0], sizes = [8, 16], strides = [1, 1]} : vector<16x128xf32> to vector<8x16xf32>
    %65 = vector.extract_strided_slice %15 {offsets = [8, 16], sizes = [8, 16], strides = [1, 1]} : vector<16x128xf32> to vector<8x16xf32>
    %66 = vector.extract_strided_slice %15 {offsets = [8, 32], sizes = [8, 16], strides = [1, 1]} : vector<16x128xf32> to vector<8x16xf32>
    %67 = vector.extract_strided_slice %15 {offsets = [8, 48], sizes = [8, 16], strides = [1, 1]} : vector<16x128xf32> to vector<8x16xf32>
    %68 = vector.extract_strided_slice %15 {offsets = [8, 64], sizes = [8, 16], strides = [1, 1]} : vector<16x128xf32> to vector<8x16xf32>
    %69 = vector.extract_strided_slice %15 {offsets = [8, 80], sizes = [8, 16], strides = [1, 1]} : vector<16x128xf32> to vector<8x16xf32>
    %70 = vector.extract_strided_slice %15 {offsets = [8, 96], sizes = [8, 16], strides = [1, 1]} : vector<16x128xf32> to vector<8x16xf32>
    %71 = vector.extract_strided_slice %15 {offsets = [8, 112], sizes = [8, 16], strides = [1, 1]} : vector<16x128xf32> to vector<8x16xf32>
    %72 = vector.shape_cast %56 : vector<8x16xf32> to vector<1x8x16xf32>
    %73 = vector.shape_cast %57 : vector<8x16xf32> to vector<1x8x16xf32>
    %74 = vector.shape_cast %58 : vector<8x16xf32> to vector<1x8x16xf32>
    %75 = vector.shape_cast %59 : vector<8x16xf32> to vector<1x8x16xf32>
    %76 = vector.shape_cast %60 : vector<8x16xf32> to vector<1x8x16xf32>
    %77 = vector.shape_cast %61 : vector<8x16xf32> to vector<1x8x16xf32>
    %78 = vector.shape_cast %62 : vector<8x16xf32> to vector<1x8x16xf32>
    %79 = vector.shape_cast %63 : vector<8x16xf32> to vector<1x8x16xf32>
    %80 = vector.shape_cast %64 : vector<8x16xf32> to vector<1x8x16xf32>
    %81 = vector.shape_cast %65 : vector<8x16xf32> to vector<1x8x16xf32>
    %82 = vector.shape_cast %66 : vector<8x16xf32> to vector<1x8x16xf32>
    %83 = vector.shape_cast %67 : vector<8x16xf32> to vector<1x8x16xf32>
    %84 = vector.shape_cast %68 : vector<8x16xf32> to vector<1x8x16xf32>
    %85 = vector.shape_cast %69 : vector<8x16xf32> to vector<1x8x16xf32>
    %86 = vector.shape_cast %70 : vector<8x16xf32> to vector<1x8x16xf32>
    %87 = vector.shape_cast %71 : vector<8x16xf32> to vector<1x8x16xf32>
    %88 = tpu.concatenate %72, %73, %74, %75, %76, %77, %78, %79, %80, %81, %82, %83, %84, %85, %86, %87 in 0 : vector<1x8x16xf32>, vector<1x8x16xf32>, vector<1x8x16xf32>, vector<1x8x16xf32>, vector<1x8x16xf32>, vector<1x8x16xf32>, vector<1x8x16xf32>, vector<1x8x16xf32>, vector<1x8x16xf32>, vector<1x8x16xf32>, vector<1x8x16xf32>, vector<1x8x16xf32>, vector<1x8x16xf32>, vector<1x8x16xf32>, vector<1x8x16xf32>, vector<1x8x16xf32> -> vector<16x8x16xf32>
    %89 = vector.extract_strided_slice %20 {offsets = [0, 0], sizes = [8, 16], strides = [1, 1]} : vector<16x128xf32> to vector<8x16xf32>
    %90 = vector.extract_strided_slice %20 {offsets = [0, 16], sizes = [8, 16], strides = [1, 1]} : vector<16x128xf32> to vector<8x16xf32>
    %91 = vector.extract_strided_slice %20 {offsets = [0, 32], sizes = [8, 16], strides = [1, 1]} : vector<16x128xf32> to vector<8x16xf32>
    %92 = vector.extract_strided_slice %20 {offsets = [0, 48], sizes = [8, 16], strides = [1, 1]} : vector<16x128xf32> to vector<8x16xf32>
    %93 = vector.extract_strided_slice %20 {offsets = [0, 64], sizes = [8, 16], strides = [1, 1]} : vector<16x128xf32> to vector<8x16xf32>
    %94 = vector.extract_strided_slice %20 {offsets = [0, 80], sizes = [8, 16], strides = [1, 1]} : vector<16x128xf32> to vector<8x16xf32>
    %95 = vector.extract_strided_slice %20 {offsets = [0, 96], sizes = [8, 16], strides = [1, 1]} : vector<16x128xf32> to vector<8x16xf32>
    %96 = vector.extract_strided_slice %20 {offsets = [0, 112], sizes = [8, 16], strides = [1, 1]} : vector<16x128xf32> to vector<8x16xf32>
    %97 = vector.extract_strided_slice %20 {offsets = [8, 0], sizes = [8, 16], strides = [1, 1]} : vector<16x128xf32> to vector<8x16xf32>
    %98 = vector.extract_strided_slice %20 {offsets = [8, 16], sizes = [8, 16], strides = [1, 1]} : vector<16x128xf32> to vector<8x16xf32>
    %99 = vector.extract_strided_slice %20 {offsets = [8, 32], sizes = [8, 16], strides = [1, 1]} : vector<16x128xf32> to vector<8x16xf32>
    %100 = vector.extract_strided_slice %20 {offsets = [8, 48], sizes = [8, 16], strides = [1, 1]} : vector<16x128xf32> to vector<8x16xf32>
    %101 = vector.extract_strided_slice %20 {offsets = [8, 64], sizes = [8, 16], strides = [1, 1]} : vector<16x128xf32> to vector<8x16xf32>
    %102 = vector.extract_strided_slice %20 {offsets = [8, 80], sizes = [8, 16], strides = [1, 1]} : vector<16x128xf32> to vector<8x16xf32>
    %103 = vector.extract_strided_slice %20 {offsets = [8, 96], sizes = [8, 16], strides = [1, 1]} : vector<16x128xf32> to vector<8x16xf32>
    %104 = vector.extract_strided_slice %20 {offsets = [8, 112], sizes = [8, 16], strides = [1, 1]} : vector<16x128xf32> to vector<8x16xf32>
    %105 = vector.shape_cast %89 : vector<8x16xf32> to vector<1x8x16xf32>
    %106 = vector.shape_cast %90 : vector<8x16xf32> to vector<1x8x16xf32>
    %107 = vector.shape_cast %91 : vector<8x16xf32> to vector<1x8x16xf32>
    %108 = vector.shape_cast %92 : vector<8x16xf32> to vector<1x8x16xf32>
    %109 = vector.shape_cast %93 : vector<8x16xf32> to vector<1x8x16xf32>
    %110 = vector.shape_cast %94 : vector<8x16xf32> to vector<1x8x16xf32>
    %111 = vector.shape_cast %95 : vector<8x16xf32> to vector<1x8x16xf32>
    %112 = vector.shape_cast %96 : vector<8x16xf32> to vector<1x8x16xf32>
    %113 = vector.shape_cast %97 : vector<8x16xf32> to vector<1x8x16xf32>
    %114 = vector.shape_cast %98 : vector<8x16xf32> to vector<1x8x16xf32>
    %115 = vector.shape_cast %99 : vector<8x16xf32> to vector<1x8x16xf32>
    %116 = vector.shape_cast %100 : vector<8x16xf32> to vector<1x8x16xf32>
    %117 = vector.shape_cast %101 : vector<8x16xf32> to vector<1x8x16xf32>
    %118 = vector.shape_cast %102 : vector<8x16xf32> to vector<1x8x16xf32>
    %119 = vector.shape_cast %103 : vector<8x16xf32> to vector<1x8x16xf32>
    %120 = vector.shape_cast %104 : vector<8x16xf32> to vector<1x8x16xf32>
    %121 = tpu.concatenate %105, %106, %107, %108, %109, %110, %111, %112, %113, %114, %115, %116, %117, %118, %119, %120 in 0 : vector<1x8x16xf32>, vector<1x8x16xf32>, vector<1x8x16xf32>, vector<1x8x16xf32>, vector<1x8x16xf32>, vector<1x8x16xf32>, vector<1x8x16xf32>, vector<1x8x16xf32>, vector<1x8x16xf32>, vector<1x8x16xf32>, vector<1x8x16xf32>, vector<1x8x16xf32>, vector<1x8x16xf32>, vector<1x8x16xf32>, vector<1x8x16xf32>, vector<1x8x16xf32> -> vector<16x8x16xf32>
    "tpu.trace_start"() <{level = 10 : i32, message = "gqd,gkd->gqk"}> : () -> ()
    %cst_20 = arith.constant dense<0.000000e+00> : vector<16x8x8xf32>
    %122 = tpu.matmul %55, %88, %cst_20 {dimension_numbers = #tpu.dot_dimension_numbers<[2], [2], [1], [1], [0, 0, 0, 1, 1, 1], [0], [0]>} : vector<16x8x16xf32>, vector<16x8x16xf32>, vector<16x8x8xf32> -> vector<16x8x8xf32>
    "tpu.trace_stop"() : () -> ()
    %cst_21 = arith.constant dense<0xFF800000> : vector<16x8xf32>
    %123 = vector.multi_reduction <maximumf>, %122, %cst_21 [2] : vector<16x8x8xf32> to vector<16x8xf32>
    %124 = vector.shape_cast %123 : vector<16x8xf32> to vector<16x8x1xf32>
    %125 = vector.broadcast %124 : vector<16x8x1xf32> to vector<16x8x8xf32>
    %126 = arith.subf %122, %125 : vector<16x8x8xf32>
    %127 = math.exp %126 : vector<16x8x8xf32>
    %cst_22 = arith.constant dense<0.000000e+00> : vector<16x8xf32>
    %128 = vector.multi_reduction <add>, %127, %cst_22 [2] : vector<16x8x8xf32> to vector<16x8xf32>
    %129 = vector.shape_cast %128 : vector<16x8xf32> to vector<16x8x1xf32>
    %130 = tpu.reciprocal %129 {approx = true} : vector<16x8x1xf32> -> vector<16x8x1xf32>
    %131 = vector.broadcast %130 : vector<16x8x1xf32> to vector<16x8x8xf32>
    %132 = arith.mulf %127, %131 : vector<16x8x8xf32>
    "tpu.trace_start"() <{level = 10 : i32, message = "gqk,gkd->gqd"}> : () -> ()
    %cst_23 = arith.constant dense<0.000000e+00> : vector<16x8x16xf32>
    %133 = tpu.matmul %132, %121, %cst_23 {dimension_numbers = #tpu.dot_dimension_numbers<[2], [1], [1], [2], [0, 0, 0, 1, 1, 2], [0], [0]>} : vector<16x8x8xf32>, vector<16x8x16xf32>, vector<16x8x16xf32> -> vector<16x8x16xf32>
    "tpu.trace_stop"() : () -> ()
    %134 = vector.extract_strided_slice %133 {offsets = [0, 0, 0], sizes = [1, 8, 16], strides = [1, 1, 1]} : vector<16x8x16xf32> to vector<1x8x16xf32>
    %135 = vector.shape_cast %134 : vector<1x8x16xf32> to vector<8x16xf32>
    %136 = vector.extract_strided_slice %133 {offsets = [1, 0, 0], sizes = [1, 8, 16], strides = [1, 1, 1]} : vector<16x8x16xf32> to vector<1x8x16xf32>
    %137 = vector.shape_cast %136 : vector<1x8x16xf32> to vector<8x16xf32>
    %138 = vector.extract_strided_slice %133 {offsets = [2, 0, 0], sizes = [1, 8, 16], strides = [1, 1, 1]} : vector<16x8x16xf32> to vector<1x8x16xf32>
    %139 = vector.shape_cast %138 : vector<1x8x16xf32> to vector<8x16xf32>
    %140 = vector.extract_strided_slice %133 {offsets = [3, 0, 0], sizes = [1, 8, 16], strides = [1, 1, 1]} : vector<16x8x16xf32> to vector<1x8x16xf32>
    %141 = vector.shape_cast %140 : vector<1x8x16xf32> to vector<8x16xf32>
    %142 = vector.extract_strided_slice %133 {offsets = [4, 0, 0], sizes = [1, 8, 16], strides = [1, 1, 1]} : vector<16x8x16xf32> to vector<1x8x16xf32>
    %143 = vector.shape_cast %142 : vector<1x8x16xf32> to vector<8x16xf32>
    %144 = vector.extract_strided_slice %133 {offsets = [5, 0, 0], sizes = [1, 8, 16], strides = [1, 1, 1]} : vector<16x8x16xf32> to vector<1x8x16xf32>
    %145 = vector.shape_cast %144 : vector<1x8x16xf32> to vector<8x16xf32>
    %146 = vector.extract_strided_slice %133 {offsets = [6, 0, 0], sizes = [1, 8, 16], strides = [1, 1, 1]} : vector<16x8x16xf32> to vector<1x8x16xf32>
    %147 = vector.shape_cast %146 : vector<1x8x16xf32> to vector<8x16xf32>
    %148 = vector.extract_strided_slice %133 {offsets = [7, 0, 0], sizes = [1, 8, 16], strides = [1, 1, 1]} : vector<16x8x16xf32> to vector<1x8x16xf32>
    %149 = vector.shape_cast %148 : vector<1x8x16xf32> to vector<8x16xf32>
    %150 = tpu.concatenate %135, %137, %139, %141, %143, %145, %147, %149 in 1 : vector<8x16xf32>, vector<8x16xf32>, vector<8x16xf32>, vector<8x16xf32>, vector<8x16xf32>, vector<8x16xf32>, vector<8x16xf32>, vector<8x16xf32> -> vector<8x128xf32>
    %151 = vector.extract_strided_slice %133 {offsets = [8, 0, 0], sizes = [1, 8, 16], strides = [1, 1, 1]} : vector<16x8x16xf32> to vector<1x8x16xf32>
    %152 = vector.shape_cast %151 : vector<1x8x16xf32> to vector<8x16xf32>
    %153 = vector.extract_strided_slice %133 {offsets = [9, 0, 0], sizes = [1, 8, 16], strides = [1, 1, 1]} : vector<16x8x16xf32> to vector<1x8x16xf32>
    %154 = vector.shape_cast %153 : vector<1x8x16xf32> to vector<8x16xf32>
    %155 = vector.extract_strided_slice %133 {offsets = [10, 0, 0], sizes = [1, 8, 16], strides = [1, 1, 1]} : vector<16x8x16xf32> to vector<1x8x16xf32>
    %156 = vector.shape_cast %155 : vector<1x8x16xf32> to vector<8x16xf32>
    %157 = vector.extract_strided_slice %133 {offsets = [11, 0, 0], sizes = [1, 8, 16], strides = [1, 1, 1]} : vector<16x8x16xf32> to vector<1x8x16xf32>
    %158 = vector.shape_cast %157 : vector<1x8x16xf32> to vector<8x16xf32>
    %159 = vector.extract_strided_slice %133 {offsets = [12, 0, 0], sizes = [1, 8, 16], strides = [1, 1, 1]} : vector<16x8x16xf32> to vector<1x8x16xf32>
    %160 = vector.shape_cast %159 : vector<1x8x16xf32> to vector<8x16xf32>
    %161 = vector.extract_strided_slice %133 {offsets = [13, 0, 0], sizes = [1, 8, 16], strides = [1, 1, 1]} : vector<16x8x16xf32> to vector<1x8x16xf32>
    %162 = vector.shape_cast %161 : vector<1x8x16xf32> to vector<8x16xf32>
    %163 = vector.extract_strided_slice %133 {offsets = [14, 0, 0], sizes = [1, 8, 16], strides = [1, 1, 1]} : vector<16x8x16xf32> to vector<1x8x16xf32>
    %164 = vector.shape_cast %163 : vector<1x8x16xf32> to vector<8x16xf32>
    %165 = vector.extract_strided_slice %133 {offsets = [15, 0, 0], sizes = [1, 8, 16], strides = [1, 1, 1]} : vector<16x8x16xf32> to vector<1x8x16xf32>
    %166 = vector.shape_cast %165 : vector<1x8x16xf32> to vector<8x16xf32>
    %167 = tpu.concatenate %152, %154, %156, %158, %160, %162, %164, %166 in 1 : vector<8x16xf32>, vector<8x16xf32>, vector<8x16xf32>, vector<8x16xf32>, vector<8x16xf32>, vector<8x16xf32>, vector<8x16xf32>, vector<8x16xf32> -> vector<8x128xf32>
    %168 = tpu.concatenate %150, %167 in 0 : vector<8x128xf32>, vector<8x128xf32> -> vector<16x128xf32>
    %cst_24 = arith.constant dense<0.000000e+00> : vector<16xf32>
    %169 = vector.multi_reduction <add>, %168, %cst_24 [1] : vector<16x128xf32> to vector<16xf32>
    %170 = vector.shape_cast %169 : vector<16xf32> to vector<16x1xf32>
    %cst_25 = arith.constant 1.280000e+02 : f32
    %171 = vector.broadcast %cst_25 : f32 to vector<16x1xf32>
    %172 = arith.divf %170, %171 : vector<16x1xf32>
    %173 = vector.broadcast %172 : vector<16x1xf32> to vector<16x128xf32>
    %174 = arith.subf %168, %173 : vector<16x128xf32>
    %175 = arith.mulf %174, %174 : vector<16x128xf32>
    %cst_26 = arith.constant dense<0.000000e+00> : vector<16xf32>
    %176 = vector.multi_reduction <add>, %175, %cst_26 [1] : vector<16x128xf32> to vector<16xf32>
    %177 = vector.shape_cast %176 : vector<16xf32> to vector<16x1xf32>
    %cst_27 = arith.constant 0.00787401571 : f32
    %178 = vector.broadcast %cst_27 : f32 to vector<16x1xf32>
    %179 = arith.mulf %177, %178 : vector<16x1xf32>
    %180 = math.rsqrt %179 : vector<16x1xf32>
    %181 = vector.broadcast %180 : vector<16x1xf32> to vector<16x128xf32>
    %182 = arith.mulf %174, %181 : vector<16x128xf32>
    %183 = arith.addf %0, %182 : vector<16x128xf32>
    %184 = arith.truncf %183 : vector<16x128xf32> to vector<16x128xbf16>
    %c0_28 = arith.constant 0 : index
    %c0_29 = arith.constant 0 : index
    %185 = vector.load %arg10[%c0_28, %c0_29] : memref<128x512xbf16, #tpu.memory_space<vmem>>, vector<128x512xbf16>
    %cst_30 = arith.constant dense<0.000000e+00> : vector<16x512xf32>
    %186 = tpu.matmul %184, %185, %cst_30 {dimension_numbers = #tpu.dot_dimension_numbers<[1], [0], [0], [1], [0, 0, 1, 1], [], []>} : vector<16x128xbf16>, vector<128x512xbf16>, vector<16x512xf32> -> vector<16x512xf32>
    %c0_31 = arith.constant 0 : index
    %c0_32 = arith.constant 0 : index
    %187 = vector.load %arg11[%c0_31, %c0_32] : memref<1x512xf32, #tpu.memory_space<vmem>>, vector<1x512xf32>
    %188 = vector.broadcast %187 : vector<1x512xf32> to vector<16x512xf32>
    %189 = arith.addf %186, %188 : vector<16x512xf32>
    %cst_33 = arith.constant 0.000000e+00 : f32
    %190 = vector.broadcast %cst_33 : f32 to vector<16x512xf32>
    %191 = arith.maximumf %189, %190 : vector<16x512xf32>
    %192 = arith.truncf %191 : vector<16x512xf32> to vector<16x512xbf16>
    %c0_34 = arith.constant 0 : index
    %c0_35 = arith.constant 0 : index
    %193 = vector.load %arg12[%c0_34, %c0_35] : memref<512x128xbf16, #tpu.memory_space<vmem>>, vector<512x128xbf16>
    %cst_36 = arith.constant dense<0.000000e+00> : vector<16x128xf32>
    %194 = tpu.matmul %192, %193, %cst_36 {dimension_numbers = #tpu.dot_dimension_numbers<[1], [0], [0], [1], [0, 0, 1, 1], [], []>} : vector<16x512xbf16>, vector<512x128xbf16>, vector<16x128xf32> -> vector<16x128xf32>
    %c0_37 = arith.constant 0 : index
    %c0_38 = arith.constant 0 : index
    %195 = vector.load %arg13[%c0_37, %c0_38] : memref<1x128xf32, #tpu.memory_space<vmem>>, vector<1x128xf32>
    %196 = vector.broadcast %195 : vector<1x128xf32> to vector<16x128xf32>
    %197 = arith.addf %194, %196 : vector<16x128xf32>
    %cst_39 = arith.constant dense<0.000000e+00> : vector<16xf32>
    %198 = vector.multi_reduction <add>, %197, %cst_39 [1] : vector<16x128xf32> to vector<16xf32>
    %199 = vector.shape_cast %198 : vector<16xf32> to vector<16x1xf32>
    %cst_40 = arith.constant 1.280000e+02 : f32
    %200 = vector.broadcast %cst_40 : f32 to vector<16x1xf32>
    %201 = arith.divf %199, %200 : vector<16x1xf32>
    %202 = vector.broadcast %201 : vector<16x1xf32> to vector<16x128xf32>
    %203 = arith.subf %197, %202 : vector<16x128xf32>
    %204 = arith.mulf %203, %203 : vector<16x128xf32>
    %cst_41 = arith.constant dense<0.000000e+00> : vector<16xf32>
    %205 = vector.multi_reduction <add>, %204, %cst_41 [1] : vector<16x128xf32> to vector<16xf32>
    %206 = vector.shape_cast %205 : vector<16xf32> to vector<16x1xf32>
    %cst_42 = arith.constant 0.00787401571 : f32
    %207 = vector.broadcast %cst_42 : f32 to vector<16x1xf32>
    %208 = arith.mulf %206, %207 : vector<16x1xf32>
    %209 = math.rsqrt %208 : vector<16x1xf32>
    %210 = vector.broadcast %209 : vector<16x1xf32> to vector<16x128xf32>
    %211 = arith.mulf %203, %210 : vector<16x128xf32>
    %212 = arith.addf %183, %211 : vector<16x128xf32>
    %c0_43 = arith.constant 0 : index
    %c0_44 = arith.constant 0 : index
    %213 = vector.load %arg14[%c0_43, %c0_44] : memref<16x128xf32, #tpu.memory_space<vmem>>, vector<16x128xf32>
    tpu.vector_store %arg14[%c0_43, %c0_44], %212 {strides = array<i32>} : memref<16x128xf32, #tpu.memory_space<vmem>>, vector<16x128xf32>,
    return
  }
  func.func @transform_0(%arg0: i32) -> (i32, i32) {
    %c0_i32 = arith.constant 0 : i32
    %c0_i32_0 = arith.constant 0 : i32
    %c0_i32_1 = arith.constant 0 : i32
    return %c0_i32, %c0_i32_0 : i32, i32
  }
  func.func @transform_1(%arg0: i32) -> (i32, i32) {
    %c0_i32 = arith.constant 0 : i32
    %c0_i32_0 = arith.constant 0 : i32
    %c0_i32_1 = arith.constant 0 : i32
    return %c0_i32, %c0_i32_0 : i32, i32
  }
  func.func @transform_2(%arg0: i32) -> (i32, i32) {
    %c0_i32 = arith.constant 0 : i32
    %c0_i32_0 = arith.constant 0 : i32
    %c0_i32_1 = arith.constant 0 : i32
    return %c0_i32, %c0_i32_0 : i32, i32
  }
  func.func @transform_3(%arg0: i32) -> (i32, i32) {
    %c0_i32 = arith.constant 0 : i32
    %c0_i32_0 = arith.constant 0 : i32
    %c0_i32_1 = arith.constant 0 : i32
    return %c0_i32, %c0_i32_0 : i32, i32
  }
  func.func @transform_4(%arg0: i32) -> (i32, i32) {
    %c0_i32 = arith.constant 0 : i32
    %c0_i32_0 = arith.constant 0 : i32
    %c0_i32_1 = arith.constant 0 : i32
    return %c0_i32, %c0_i32_0 : i32, i32
  }
  func.func @transform_5(%arg0: i32) -> (i32, i32) {
    %c0_i32 = arith.constant 0 : i32
    %c0_i32_0 = arith.constant 0 : i32
    %c0_i32_1 = arith.constant 0 : i32
    return %c0_i32, %c0_i32_0 : i32, i32
  }
  func.func @transform_6(%arg0: i32) -> (i32, i32) {
    %c0_i32 = arith.constant 0 : i32
    %c0_i32_0 = arith.constant 0 : i32
    %c0_i32_1 = arith.constant 0 : i32
    return %c0_i32, %c0_i32_0 : i32, i32
  }
  func.func @transform_7(%arg0: i32) -> (i32, i32) {
    %c0_i32 = arith.constant 0 : i32
    %c0_i32_0 = arith.constant 0 : i32
    %c0_i32_1 = arith.constant 0 : i32
    return %c0_i32, %c0_i32_0 : i32, i32
  }
  func.func @transform_8(%arg0: i32) -> (i32, i32) {
    %c0_i32 = arith.constant 0 : i32
    %c0_i32_0 = arith.constant 0 : i32
    %c0_i32_1 = arith.constant 0 : i32
    return %c0_i32, %c0_i32_0 : i32, i32
  }
  func.func @transform_9(%arg0: i32) -> (i32, i32) {
    %c0_i32 = arith.constant 0 : i32
    %c0_i32_0 = arith.constant 0 : i32
    %c0_i32_1 = arith.constant 0 : i32
    return %c0_i32, %c0_i32_0 : i32, i32
  }
  func.func @transform_10(%arg0: i32) -> (i32, i32) {
    %c0_i32 = arith.constant 0 : i32
    %c0_i32_0 = arith.constant 0 : i32
    %c0_i32_1 = arith.constant 0 : i32
    return %c0_i32, %c0_i32_0 : i32, i32
  }
  func.func @transform_11(%arg0: i32) -> (i32, i32) {
    %c0_i32 = arith.constant 0 : i32
    %c0_i32_0 = arith.constant 0 : i32
    %c0_i32_1 = arith.constant 0 : i32
    return %c0_i32, %c0_i32_0 : i32, i32
  }
  func.func @transform_12(%arg0: i32) -> (i32, i32) {
    %c0_i32 = arith.constant 0 : i32
    %c0_i32_0 = arith.constant 0 : i32
    %c0_i32_1 = arith.constant 0 : i32
    return %c0_i32, %c0_i32_0 : i32, i32
  }
  func.func @transform_13(%arg0: i32) -> (i32, i32) {
    %c0_i32 = arith.constant 0 : i32
    %c0_i32_0 = arith.constant 0 : i32
    %c0_i32_1 = arith.constant 0 : i32
    return %c0_i32, %c0_i32_0 : i32, i32
  }
}

</mosaic_0001>

<llo_original>
// kernel: tpu_custom_call.1
$region0: #{tpu_custom_call.1}
  #allocation0 [shape = 'u32[]', space=smem, size = 0x4, offset = 0x4, fixed_abs, tag = 'smem constant byte address 0x4 - core index']
  #allocation1 [shape = 'u32[72,128]{1,0:T(1,128)}', space=vmem, size = 0x9000, scoped, tag = 'internal scratch']
  %s0 = inlined_call_operand.hbm [shape: f32[16,128], index: 0, kind: input, shape index: {}]
  %s1 = inlined_call_operand.hbm [shape: f32[16,128], index: 1, kind: input, shape index: {}]
  %s2 = inlined_call_operand.hbm [shape: f32[16,128], index: 2, kind: input, shape index: {}]
  %s3 = inlined_call_operand.hbm [shape: bf16[128,128], index: 3, kind: input, shape index: {}]
  %s4 = inlined_call_operand.vmem [shape: f32[1,128], index: 4, kind: input, shape index: {}]
  %s5 = inlined_call_operand.hbm [shape: bf16[128,128], index: 5, kind: input, shape index: {}]
  %s6 = inlined_call_operand.vmem [shape: f32[1,128], index: 6, kind: input, shape index: {}]
  %s7 = inlined_call_operand.hbm [shape: bf16[128,128], index: 7, kind: input, shape index: {}]
  %s8 = inlined_call_operand.vmem [shape: f32[1,128], index: 8, kind: input, shape index: {}]
  %s9 = inlined_call_operand.hbm [shape: bf16[128,512], index: 9, kind: input, shape index: {}]
  %s10 = inlined_call_operand.vmem [shape: f32[1,512], index: 10, kind: input, shape index: {}]
  %s11 = inlined_call_operand.hbm [shape: bf16[512,128], index: 11, kind: input, shape index: {}]
  %s12 = inlined_call_operand.vmem [shape: f32[1,128], index: 12, kind: input, shape index: {}]
  %s13 = inlined_call_operand.hbm [shape: f32[16,128], index: 13, kind: output, shape index: {}]
  %s14 = sld [smem:[#allocation0]]
  $region94: #{tpu_custom_call.1} parent=0
    _
  %s16 = ssub.s32 1, %s14
  %s17 = scalar_select 0, %s16, %s14
  $region1: #{tpu_custom_call.1} parent=0
    #allocation2 [shape = 'u8[8192]{0}', space=vmem, size = 0x2000, scoped, tag = 'input window, operand 0, single buffered']
    #allocation3 [shape = 's32[1]{0}', space=sflag, size = 0x4, scoped, tag = 'scoped memory for tpu_custom_call.1']
    #allocation4 [shape = 's32[1]{0}', space=sflag, size = 0x4, scoped, tag = 'scoped memory for tpu_custom_call.1']
    #allocation5 [shape = 'u8[8192]{0}', space=vmem, size = 0x2000, scoped, tag = 'input window, operand 1, single buffered']
    #allocation6 [shape = 's32[1]{0}', space=sflag, size = 0x4, scoped, tag = 'scoped memory for tpu_custom_call.1']
    #allocation7 [shape = 'u8[8192]{0}', space=vmem, size = 0x2000, scoped, tag = 'input window, operand 2, single buffered']
    #allocation8 [shape = 'u8[32768]{0}', space=vmem, size = 0x8000, scoped, tag = 'input window, operand 3, single buffered']
    #allocation9 [shape = 's32[1]{0}', space=sflag, size = 0x4, scoped, tag = 'scoped memory for tpu_custom_call.1']
    #allocation10 [shape = 'u8[32768]{0}', space=vmem, size = 0x8000, scoped, tag = 'input window, operand 5, single buffered']
    #allocation11 [shape = 'u8[32768]{0}', space=vmem, size = 0x8000, scoped, tag = 'input window, operand 7, single buffered']
    #allocation12 [shape = 's32[1]{0}', space=sflag, size = 0x4, scoped, tag = 'scoped memory for tpu_custom_call.1']
    #allocation13 [shape = 'u8[131072]{0}', space=vmem, size = 0x20000, scoped, tag = 'input window, operand 9, single buffered']
    #allocation14 [shape = 'u8[131072]{0}', space=vmem, size = 0x20000, scoped, tag = 'input window, operand 11, single buffered']
    #allocation15 [shape = 's32[1]{0}', space=sflag, size = 0x4, scoped, tag = 'scoped memory for tpu_custom_call.1']
    #allocation16 [shape = 'u8[8192]{0}', space=vmem, size = 0x2000, scoped, tag = 'output window, operand 0, single buffered']
    %18 = vsyncpa [#allocation3], 0
    %19 = vsyncpa [#allocation6], 0
    %20 = vsyncpa [#allocation9], 0
    %21 = vsyncpa [#allocation12], 0
    %22 = vsyncpa [#allocation15], 0
    %23 = vsyncpa [#allocation4], 0
    // Predicated region
    $region2: #{tpu_custom_call.1} parent=1 // pred_check
      _
    $region3: #{tpu_custom_call.1} parent=1 // pred_check_branch
      %25 = sbr.rel (0) target = $region5
    $region4: #{tpu_custom_call.1} parent=1 // pred_region
      %27 = vsyncadd [#allocation3], 0
      %s28 = sshll.u32 %s0, 4
      %s29 = int_to_ptr.hbm [resolvable:$true] %s28
      %s30 = sshll.u32 [#allocation2], 4
      %s31 = int_to_ptr.vmem [resolvable:$true] %s30
      %36 = dma.hbm_to_vmem [thread:$0]  %s29, 256, %s31, [#allocation3], 128, 128, 8
    $region5: #{tpu_custom_call.1} parent=1 // pred_fallthru
      _
    // Predicated region
    $region6: #{tpu_custom_call.1} parent=1 // pred_check
      _
    $region7: #{tpu_custom_call.1} parent=1 // pred_check_branch
      %38 = sbr.rel (0) target = $region9
    $region8: #{tpu_custom_call.1} parent=1 // pred_region
      %40 = vsyncadd [#allocation6], 0
      %s41 = sshll.u32 %s1, 4
      %s42 = int_to_ptr.hbm [resolvable:$true] %s41
      %s43 = sshll.u32 [#allocation5], 4
      %s44 = int_to_ptr.vmem [resolvable:$true] %s43
      %49 = dma.hbm_to_vmem [thread:$0]  %s42, 256, %s44, [#allocation6], 128, 128, 8
    $region9: #{tpu_custom_call.1} parent=1 // pred_fallthru
      _
    // Predicated region
    $region10: #{tpu_custom_call.1} parent=1 // pred_check
      _
    $region11: #{tpu_custom_call.1} parent=1 // pred_check_branch
      %51 = sbr.rel (0) target = $region13
    $region12: #{tpu_custom_call.1} parent=1 // pred_region
      %53 = vsyncadd [#allocation6], 0
      %s54 = sshll.u32 %s2, 4
      %s55 = int_to_ptr.hbm [resolvable:$true] %s54
      %s56 = sshll.u32 [#allocation7], 4
      %s57 = int_to_ptr.vmem [resolvable:$true] %s56
      %62 = dma.hbm_to_vmem [thread:$0]  %s55, 256, %s57, [#allocation6], 128, 128, 8
    $region13: #{tpu_custom_call.1} parent=1 // pred_fallthru
      _
    // Predicated region
    $region14: #{tpu_custom_call.1} parent=1 // pred_check
      _
    $region15: #{tpu_custom_call.1} parent=1 // pred_check_branch
      %64 = sbr.rel (0) target = $region17
    $region16: #{tpu_custom_call.1} parent=1 // pred_region
      %66 = vsyncadd [#allocation9], 0
      %s67 = sshll.u32 %s3, 4
      %s68 = int_to_ptr.hbm [resolvable:$true] %s67
      %s69 = sshll.u32 [#allocation8], 4
      %s70 = int_to_ptr.vmem [resolvable:$true] %s69
      %75 = dma.hbm_to_vmem [thread:$0]  %s68, 1024, %s70, [#allocation9], 64, 64, 4
    $region17: #{tpu_custom_call.1} parent=1 // pred_fallthru
      _
    // Predicated region
    $region18: #{tpu_custom_call.1} parent=1 // pred_check
      _
    $region19: #{tpu_custom_call.1} parent=1 // pred_check_branch
      %77 = sbr.rel (0) target = $region21
    $region20: #{tpu_custom_call.1} parent=1 // pred_region
      _
    $region21: #{tpu_custom_call.1} parent=1 // pred_fallthru
      _
    // Predicated region
    $region22: #{tpu_custom_call.1} parent=1 // pred_check
      _
    $region23: #{tpu_custom_call.1} parent=1 // pred_check_branch
      %79 = sbr.rel (0) target = $region25
    $region24: #{tpu_custom_call.1} parent=1 // pred_region
      %81 = vsyncadd [#allocation9], 0
      %s82 = sshll.u32 %s5, 4
      %s83 = int_to_ptr.hbm [resolvable:$true] %s82
      %s84 = sshll.u32 [#allocation10], 4
      %s85 = int_to_ptr.vmem [resolvable:$true] %s84
      %90 = dma.hbm_to_vmem [thread:$0]  %s83, 1024, %s85, [#allocation9], 64, 64, 4
    $region25: #{tpu_custom_call.1} parent=1 // pred_fallthru
      _
    // Predicated region
    $region26: #{tpu_custom_call.1} parent=1 // pred_check
      _
    $region27: #{tpu_custom_call.1} parent=1 // pred_check_branch
      %92 = sbr.rel (0) target = $region29
    $region28: #{tpu_custom_call.1} parent=1 // pred_region
      _
    $region29: #{tpu_custom_call.1} parent=1 // pred_fallthru
      _
    // Predicated region
    $region30: #{tpu_custom_call.1} parent=1 // pred_check
      _
    $region31: #{tpu_custom_call.1} parent=1 // pred_check_branch
      %94 = sbr.rel (0) target = $region33
    $region32: #{tpu_custom_call.1} parent=1 // pred_region
      %96 = vsyncadd [#allocation12], 0
      %s97 = sshll.u32 %s7, 4
      %s98 = int_to_ptr.hbm [resolvable:$true] %s97
      %s99 = sshll.u32 [#allocation11], 4
      %s100 = int_to_ptr.vmem [resolvable:$true] %s99
      %105 = dma.hbm_to_vmem [thread:$0]  %s98, 1024, %s100, [#allocation12], 64, 64, 4
    $region33: #{tpu_custom_call.1} parent=1 // pred_fallthru
      _
    // Predicated region
    $region34: #{tpu_custom_call.1} parent=1 // pred_check
      _
    $region35: #{tpu_custom_call.1} parent=1 // pred_check_branch
      %107 = sbr.rel (0) target = $region37
    $region36: #{tpu_custom_call.1} parent=1 // pred_region
      _
    $region37: #{tpu_custom_call.1} parent=1 // pred_fallthru
      _
    // Predicated region
    $region38: #{tpu_custom_call.1} parent=1 // pred_check
      _
    $region39: #{tpu_custom_call.1} parent=1 // pred_check_branch
      %109 = sbr.rel (0) target = $region41
    $region40: #{tpu_custom_call.1} parent=1 // pred_region
      %111 = vsyncadd [#allocation12], 0
      %s112 = sshll.u32 %s9, 4
      %s113 = int_to_ptr.hbm [resolvable:$true] %s112
      %s114 = sshll.u32 [#allocation13], 4
      %s115 = int_to_ptr.vmem [resolvable:$true] %s114
      %120 = dma.hbm_to_vmem [thread:$0]  %s113, 4096, %s115, [#allocation12], 256, 256, 16
    $region41: #{tpu_custom_call.1} parent=1 // pred_fallthru
      _
    // Predicated region
    $region42: #{tpu_custom_call.1} parent=1 // pred_check
      _
    $region43: #{tpu_custom_call.1} parent=1 // pred_check_branch
      %122 = sbr.rel (0) target = $region45
    $region44: #{tpu_custom_call.1} parent=1 // pred_region
      _
    $region45: #{tpu_custom_call.1} parent=1 // pred_fallthru
      _
    // Predicated region
    $region46: #{tpu_custom_call.1} parent=1 // pred_check
      _
    $region47: #{tpu_custom_call.1} parent=1 // pred_check_branch
      %124 = sbr.rel (0) target = $region49
    $region48: #{tpu_custom_call.1} parent=1 // pred_region
      %126 = vsyncadd [#allocation15], 0
      %s127 = sshll.u32 %s11, 4
      %s128 = int_to_ptr.hbm [resolvable:$true] %s127
      %s129 = sshll.u32 [#allocation14], 4
      %s130 = int_to_ptr.vmem [resolvable:$true] %s129
      %135 = dma.hbm_to_vmem [thread:$0]  %s128, 4096, %s130, [#allocation15], 64, 64, 4
    $region49: #{tpu_custom_call.1} parent=1 // pred_fallthru
      _
    // Predicated region
    $region50: #{tpu_custom_call.1} parent=1 // pred_check
      _
    $region51: #{tpu_custom_call.1} parent=1 // pred_check_branch
      %137 = sbr.rel (0) target = $region53
    $region52: #{tpu_custom_call.1} parent=1 // pred_region
      _
    $region53: #{tpu_custom_call.1} parent=1 // pred_fallthru
      _
    // Predicated region
    $region54: #{tpu_custom_call.1} parent=1 // pred_check
      _
    $region55: #{tpu_custom_call.1} parent=1 // pred_check_branch
      %139 = sbr.rel (0) target = $region57
    $region56: #{tpu_custom_call.1} parent=1 // pred_region
      %141 = dma.done [#allocation3], 256
    $region57: #{tpu_custom_call.1} parent=1 // pred_fallthru
      _
    // Predicated region
    $region58: #{tpu_custom_call.1} parent=1 // pred_check
      _
    $region59: #{tpu_custom_call.1} parent=1 // pred_check_branch
      %143 = sbr.rel (0) target = $region61
    $region60: #{tpu_custom_call.1} parent=1 // pred_region
      %145 = dma.done [#allocation6], 256
    $region61: #{tpu_custom_call.1} parent=1 // pred_fallthru
      _
    // Predicated region
    $region62: #{tpu_custom_call.1} parent=1 // pred_check
      _
    $region63: #{tpu_custom_call.1} parent=1 // pred_check_branch
      %147 = sbr.rel (0) target = $region65
    $region64: #{tpu_custom_call.1} parent=1 // pred_region
      %149 = dma.done [#allocation6], 256
    $region65: #{tpu_custom_call.1} parent=1 // pred_fallthru
      _
    // Predicated region
    $region66: #{tpu_custom_call.1} parent=1 // pred_check
      _
    $region67: #{tpu_custom_call.1} parent=1 // pred_check_branch
      %151 = sbr.rel (0) target = $region69
    $region68: #{tpu_custom_call.1} parent=1 // pred_region
      %153 = dma.done [#allocation9], 1024
    $region69: #{tpu_custom_call.1} parent=1 // pred_fallthru
      _
    // Predicated region
    $region70: #{tpu_custom_call.1} parent=1 // pred_check
      _
    $region71: #{tpu_custom_call.1} parent=1 // pred_check_branch
      %155 = sbr.rel (0) target = $region73
    $region72: #{tpu_custom_call.1} parent=1 // pred_region
      %157 = dma.done [#allocation9], 1024
    $region73: #{tpu_custom_call.1} parent=1 // pred_fallthru
      _
    // Predicated region
    $region74: #{tpu_custom_call.1} parent=1 // pred_check
      _
    $region75: #{tpu_custom_call.1} parent=1 // pred_check_branch
      %159 = sbr.rel (0) target = $region77
    $region76: #{tpu_custom_call.1} parent=1 // pred_region
      %161 = dma.done [#allocation12], 1024
    $region77: #{tpu_custom_call.1} parent=1 // pred_fallthru
      _
    // Predicated region
    $region78: #{tpu_custom_call.1} parent=1 // pred_check
      _
    $region79: #{tpu_custom_call.1} parent=1 // pred_check_branch
      %163 = sbr.rel (0) target = $region81
    $region80: #{tpu_custom_call.1} parent=1 // pred_region
      %165 = dma.done [#allocation12], 4096
    $region81: #{tpu_custom_call.1} parent=1 // pred_fallthru
      _
    // Predicated region
    $region82: #{tpu_custom_call.1} parent=1 // pred_check
      _
    $region83: #{tpu_custom_call.1} parent=1 // pred_check_branch
      %167 = sbr.rel (0) target = $region85
    $region84: #{tpu_custom_call.1} parent=1 // pred_region
      %169 = dma.done [#allocation15], 4096
    $region85: #{tpu_custom_call.1} parent=1 // pred_fallthru
      _
    %v170 = vld [vmem:[#allocation2] sm:$0xff]
    %v171 = vld [vmem:[#allocation2 + $0x8] sm:$0xff]
    %v172 = vpack.c.bf16 %v171, %v170
    %v173 = vld [vmem:[#allocation5] sm:$0xff]
    %v174 = vld [vmem:[#allocation5 + $0x8] sm:$0xff]
    %v175 = vpack.c.bf16 %v174, %v173
    %v176 = vld [vmem:[#allocation7] sm:$0xff]
    %v177 = vld [vmem:[#allocation7 + $0x8] sm:$0xff]
    %v178 = vpack.c.bf16 %v177, %v176
    %v179 = vld [vmem:[#allocation8] sm:$0xf]
    %v180 = vld [vmem:[#allocation8 + $0x4] sm:$0xf]
    %v181 = vld [vmem:[#allocation8 + $0x8] sm:$0xf]
    %v182 = vld [vmem:[#allocation8 + $0xc] sm:$0xf]
    %v183 = vld [vmem:[#allocation8 + $0x10] sm:$0xf]
    %v184 = vld [vmem:[#allocation8 + $0x14] sm:$0xf]
    %v185 = vld [vmem:[#allocation8 + $0x18] sm:$0xf]
    %v186 = vld [vmem:[#allocation8 + $0x1c] sm:$0xf]
    %v187 = vld [vmem:[#allocation8 + $0x20] sm:$0xf]
    %v188 = vld [vmem:[#allocation8 + $0x24] sm:$0xf]
    %v189 = vld [vmem:[#allocation8 + $0x28] sm:$0xf]
    %v190 = vld [vmem:[#allocation8 + $0x2c] sm:$0xf]
    %v191 = vld [vmem:[#allocation8 + $0x30] sm:$0xf]
    %v192 = vld [vmem:[#allocation8 + $0x34] sm:$0xf]
    %v193 = vld [vmem:[#allocation8 + $0x38] sm:$0xf]
    %v194 = vld [vmem:[#allocation8 + $0x3c] sm:$0xf]
    %v195 = vld [vmem:[%s4] sm:$0x1]
    %v197 = vperm.slane %v195, 0
    %v215 = vunpack.c.l.b16 %v179
    %v216 = vunpack.c.l.b16 %v180
    %v217 = vunpack.c.l.b16 %v181
    %v218 = vunpack.c.l.b16 %v182
    %v219 = vunpack.c.l.b16 %v183
    %v220 = vunpack.c.l.b16 %v184
    %v221 = vunpack.c.l.b16 %v185
    %v222 = vunpack.c.l.b16 %v186
    %v223 = vunpack.c.l.b16 %v187
    %v224 = vunpack.c.l.b16 %v188
    %v225 = vunpack.c.l.b16 %v189
    %v226 = vunpack.c.l.b16 %v190
    %v227 = vunpack.c.l.b16 %v191
    %v228 = vunpack.c.l.b16 %v192
    %v229 = vunpack.c.l.b16 %v193
    %v230 = vunpack.c.l.b16 %v194
    %v231 = vpack.c.b16 %v216, %v215
    %v232 = vpack.c.b16 %v218, %v217
    %v233 = vpack.c.b16 %v220, %v219
    %v234 = vpack.c.b16 %v222, %v221
    %v235 = vpack.c.b16 %v224, %v223
    %v236 = vpack.c.b16 %v226, %v225
    %v237 = vpack.c.b16 %v228, %v227
    %v238 = vpack.c.b16 %v230, %v229
    %247 = vmatpush.bf16.msra.mxu0 %v238
    %248 = vmatpush.bf16.msra.mxu0 %v237
    %249 = vmatpush.bf16.msra.mxu0 %v236
    %250 = vmatpush.bf16.msra.mxu0 %v235
    %251 = vmatpush.bf16.msra.mxu0 %v234
    %252 = vmatpush.bf16.msra.mxu0 %v233
    %253 = vmatpush.bf16.msra.mxu0 %v232
    %254 = vmatpush.bf16.msra.mxu0 %v231
    %255 = vmatmul.bf16.gmra.mxu0 %v172
    %v256 = vpop.f32.mrf.mxu0
    %v257 = vadd.f32 %v197, %v256
    %v258 = vpop.f32.mrf.mxu0
    %v259 = vadd.f32 %v197, %v258
    %260 = vdwg.mxu0
    %v261 = vld [vmem:[#allocation10] sm:$0xf]
    %v262 = vld [vmem:[#allocation10 + $0x4] sm:$0xf]
    %v263 = vld [vmem:[#allocation10 + $0x8] sm:$0xf]
    %v264 = vld [vmem:[#allocation10 + $0xc] sm:$0xf]
    %v265 = vld [vmem:[#allocation10 + $0x10] sm:$0xf]
    %v266 = vld [vmem:[#allocation10 + $0x14] sm:$0xf]
    %v267 = vld [vmem:[#allocation10 + $0x18] sm:$0xf]
    %v268 = vld [vmem:[#allocation10 + $0x1c] sm:$0xf]
    %v269 = vld [vmem:[#allocation10 + $0x20] sm:$0xf]
    %v270 = vld [vmem:[#allocation10 + $0x24] sm:$0xf]
    %v271 = vld [vmem:[#allocation10 + $0x28] sm:$0xf]
    %v272 = vld [vmem:[#allocation10 + $0x2c] sm:$0xf]
    %v273 = vld [vmem:[#allocation10 + $0x30] sm:$0xf]
    %v274 = vld [vmem:[#allocation10 + $0x34] sm:$0xf]
    %v275 = vld [vmem:[#allocation10 + $0x38] sm:$0xf]
    %v276 = vld [vmem:[#allocation10 + $0x3c] sm:$0xf]
    %v277 = vld [vmem:[%s6] sm:$0x1]
    %v279 = vperm.slane %v277, 0
    %v297 = vunpack.c.l.b16 %v261
    %v298 = vunpack.c.l.b16 %v262
    %v299 = vunpack.c.l.b16 %v263
    %v300 = vunpack.c.l.b16 %v264
    %v301 = vunpack.c.l.b16 %v265
    %v302 = vunpack.c.l.b16 %v266
    %v303 = vunpack.c.l.b16 %v267
    %v304 = vunpack.c.l.b16 %v268
    %v305 = vunpack.c.l.b16 %v269
    %v306 = vunpack.c.l.b16 %v270
    %v307 = vunpack.c.l.b16 %v271
    %v308 = vunpack.c.l.b16 %v272
    %v309 = vunpack.c.l.b16 %v273
    %v310 = vunpack.c.l.b16 %v274
    %v311 = vunpack.c.l.b16 %v275
    %v312 = vunpack.c.l.b16 %v276
    %v313 = vpack.c.b16 %v298, %v297
    %v314 = vpack.c.b16 %v300, %v299
    %v315 = vpack.c.b16 %v302, %v301
    %v316 = vpack.c.b16 %v304, %v303
    %v317 = vpack.c.b16 %v306, %v305
    %v318 = vpack.c.b16 %v308, %v307
    %v319 = vpack.c.b16 %v310, %v309
    %v320 = vpack.c.b16 %v312, %v311
    %329 = vmatpush.bf16.msra.mxu0 %v320
    %330 = vmatpush.bf16.msra.mxu0 %v319
    %331 = vmatpush.bf16.msra.mxu0 %v318
    %332 = vmatpush.bf16.msra.mxu0 %v317
    %333 = vmatpush.bf16.msra.mxu0 %v316
    %334 = vmatpush.bf16.msra.mxu0 %v315
    %335 = vmatpush.bf16.msra.mxu0 %v314
    %336 = vmatpush.bf16.msra.mxu0 %v313
    %337 = vmatmul.bf16.gmra.mxu0 %v175
    %v338 = vpop.f32.mrf.mxu0
    %v339 = vadd.f32 %v279, %v338
    %v340 = vpop.f32.mrf.mxu0
    %v341 = vadd.f32 %v279, %v340
    %342 = vdwg.mxu0
    %v343 = vld [vmem:[#allocation11] sm:$0xf]
    %v344 = vld [vmem:[#allocation11 + $0x4] sm:$0xf]
    %v345 = vld [vmem:[#allocation11 + $0x8] sm:$0xf]
    %v346 = vld [vmem:[#allocation11 + $0xc] sm:$0xf]
    %v347 = vld [vmem:[#allocation11 + $0x10] sm:$0xf]
    %v348 = vld [vmem:[#allocation11 + $0x14] sm:$0xf]
    %v349 = vld [vmem:[#allocation11 + $0x18] sm:$0xf]
    %v350 = vld [vmem:[#allocation11 + $0x1c] sm:$0xf]
    %v351 = vld [vmem:[#allocation11 + $0x20] sm:$0xf]
    %v352 = vld [vmem:[#allocation11 + $0x24] sm:$0xf]
    %v353 = vld [vmem:[#allocation11 + $0x28] sm:$0xf]
    %v354 = vld [vmem:[#allocation11 + $0x2c] sm:$0xf]
    %v355 = vld [vmem:[#allocation11 + $0x30] sm:$0xf]
    %v356 = vld [vmem:[#allocation11 + $0x34] sm:$0xf]
    %v357 = vld [vmem:[#allocation11 + $0x38] sm:$0xf]
    %v358 = vld [vmem:[#allocation11 + $0x3c] sm:$0xf]
    %v359 = vld [vmem:[%s8] sm:$0x1]
    %v361 = vperm.slane %v359, 0
    %v379 = vunpack.c.l.b16 %v343
    %v380 = vunpack.c.l.b16 %v344
    %v381 = vunpack.c.l.b16 %v345
    %v382 = vunpack.c.l.b16 %v346
    %v383 = vunpack.c.l.b16 %v347
    %v384 = vunpack.c.l.b16 %v348
    %v385 = vunpack.c.l.b16 %v349
    %v386 = vunpack.c.l.b16 %v350
    %v387 = vunpack.c.l.b16 %v351
    %v388 = vunpack.c.l.b16 %v352
    %v389 = vunpack.c.l.b16 %v353
    %v390 = vunpack.c.l.b16 %v354
    %v391 = vunpack.c.l.b16 %v355
    %v392 = vunpack.c.l.b16 %v356
    %v393 = vunpack.c.l.b16 %v357
    %v394 = vunpack.c.l.b16 %v358
    %v395 = vpack.c.b16 %v380, %v379
    %v396 = vpack.c.b16 %v382, %v381
    %v397 = vpack.c.b16 %v384, %v383
    %v398 = vpack.c.b16 %v386, %v385
    %v399 = vpack.c.b16 %v388, %v387
    %v400 = vpack.c.b16 %v390, %v389
    %v401 = vpack.c.b16 %v392, %v391
    %v402 = vpack.c.b16 %v394, %v393
    %411 = vmatpush.bf16.msra.mxu0 %v402
    %412 = vmatpush.bf16.msra.mxu0 %v401
    %413 = vmatpush.bf16.msra.mxu0 %v400
    %414 = vmatpush.bf16.msra.mxu0 %v399
    %415 = vmatpush.bf16.msra.mxu0 %v398
    %416 = vmatpush.bf16.msra.mxu0 %v397
    %417 = vmatpush.bf16.msra.mxu0 %v396
    %418 = vmatpush.bf16.msra.mxu0 %v395
    %419 = vmatmul.bf16.gmra.mxu0 %v178
    %v420 = vpop.f32.mrf.mxu0
    %v421 = vadd.f32 %v361, %v420
    %v422 = vpop.f32.mrf.mxu0
    %v423 = vadd.f32 %v361, %v422
    %424 = vdwg.mxu0
    %v425 = vmul.f32 %v257, 0.25
    %v426 = vmul.f32 %v259, 0.25
    %428 = vrot.lane.b32.xlu0 %v425, 112
    %v429 = vpop.permute.xlu0 %428
    %430 = vrot.lane.b32.xlu0 %v425, 96
    %v431 = vpop.permute.xlu0 %430
    %432 = vrot.lane.b32.xlu0 %v425, 80
    %v433 = vpop.permute.xlu0 %432
    %434 = vrot.lane.b32.xlu0 %v425, 64
    %v435 = vpop.permute.xlu0 %434
    %436 = vrot.lane.b32.xlu0 %v425, 48
    %v437 = vpop.permute.xlu0 %436
    %438 = vrot.lane.b32.xlu0 %v425, 32
    %v439 = vpop.permute.xlu0 %438
    %440 = vrot.lane.b32.xlu0 %v425, 16
    %v441 = vpop.permute.xlu0 %440
    %443 = vrot.lane.b32.xlu0 %v426, 112
    %v444 = vpop.permute.xlu0 %443
    %445 = vrot.lane.b32.xlu0 %v426, 96
    %v446 = vpop.permute.xlu0 %445
    %447 = vrot.lane.b32.xlu0 %v426, 80
    %v448 = vpop.permute.xlu0 %447
    %449 = vrot.lane.b32.xlu0 %v426, 64
    %v450 = vpop.permute.xlu0 %449
    %451 = vrot.lane.b32.xlu0 %v426, 48
    %v452 = vpop.permute.xlu0 %451
    %453 = vrot.lane.b32.xlu0 %v426, 32
    %v454 = vpop.permute.xlu0 %453
    %455 = vrot.lane.b32.xlu0 %v426, 16
    %v456 = vpop.permute.xlu0 %455
    %458 = vrot.lane.b32.xlu0 %v339, 112
    %v459 = vpop.permute.xlu0 %458
    %460 = vrot.lane.b32.xlu0 %v339, 96
    %v461 = vpop.permute.xlu0 %460
    %462 = vrot.lane.b32.xlu0 %v339, 80
    %v463 = vpop.permute.xlu0 %462
    %464 = vrot.lane.b32.xlu0 %v339, 64
    %v465 = vpop.permute.xlu0 %464
    %466 = vrot.lane.b32.xlu0 %v339, 48
    %v467 = vpop.permute.xlu0 %466
    %468 = vrot.lane.b32.xlu0 %v339, 32
    %v469 = vpop.permute.xlu0 %468
    %470 = vrot.lane.b32.xlu0 %v339, 16
    %v471 = vpop.permute.xlu0 %470
    %473 = vrot.lane.b32.xlu0 %v341, 112
    %v474 = vpop.permute.xlu0 %473
    %475 = vrot.lane.b32.xlu0 %v341, 96
    %v476 = vpop.permute.xlu0 %475
    %477 = vrot.lane.b32.xlu0 %v341, 80
    %v478 = vpop.permute.xlu0 %477
    %479 = vrot.lane.b32.xlu0 %v341, 64
    %v480 = vpop.permute.xlu0 %479
    %481 = vrot.lane.b32.xlu0 %v341, 48
    %v482 = vpop.permute.xlu0 %481
    %483 = vrot.lane.b32.xlu0 %v341, 32
    %v484 = vpop.permute.xlu0 %483
    %485 = vrot.lane.b32.xlu0 %v341, 16
    %v486 = vpop.permute.xlu0 %485
    %488 = vrot.lane.b32.xlu0 %v421, 112
    %v489 = vpop.permute.xlu0 %488
    %491 = vrot.lane.b32.xlu0 %v421, 96
    %v492 = vpop.permute.xlu0 %491
    %494 = vrot.lane.b32.xlu0 %v421, 80
    %v495 = vpop.permute.xlu0 %494
    %497 = vrot.lane.b32.xlu0 %v421, 64
    %v498 = vpop.permute.xlu0 %497
    %500 = vrot.lane.b32.xlu0 %v421, 48
    %v501 = vpop.permute.xlu0 %500
    %503 = vrot.lane.b32.xlu0 %v421, 32
    %v504 = vpop.permute.xlu0 %503
    %506 = vrot.lane.b32.xlu0 %v421, 16
    %v507 = vpop.permute.xlu0 %506
    %510 = vrot.lane.b32.xlu0 %v423, 112
    %v511 = vpop.permute.xlu0 %510
    %513 = vrot.lane.b32.xlu0 %v423, 96
    %v514 = vpop.permute.xlu0 %513
    %516 = vrot.lane.b32.xlu0 %v423, 80
    %v517 = vpop.permute.xlu0 %516
    %519 = vrot.lane.b32.xlu0 %v423, 64
    %v520 = vpop.permute.xlu0 %519
    %522 = vrot.lane.b32.xlu0 %v423, 48
    %v523 = vpop.permute.xlu0 %522
    %525 = vrot.lane.b32.xlu0 %v423, 32
    %v526 = vpop.permute.xlu0 %525
    %528 = vrot.lane.b32.xlu0 %v423, 16
    %v529 = vpop.permute.xlu0 %528
    %vm531 = vcmask 130048
    %v532 = vsel %vm531, %v425, 0
    %v534 = vsel %vm531, %v339, 0
    %536 = vmatpush.xpose.msra.mxu0 0.0
    %537 = vmatpush.xpose.msra.mxu0 0.0
    %538 = vmatpush.xpose.msra.mxu0 0.0
    %539 = vmatpush.xpose.msra.mxu0 0.0
    %540 = vmatpush.xpose.msra.mxu0 0.0
    %541 = vmatpush.xpose.msra.mxu0 0.0
    %542 = vmatpush.xpose.msra.mxu0 0.0
    %543 = vmatpush.xpose.msra.mxu0 0.0
    %544 = vmatpush.xpose.msra.mxu0 0.0
    %545 = vmatpush.xpose.msra.mxu0 0.0
    %546 = vmatpush.xpose.msra.mxu0 0.0
    %547 = vmatpush.xpose.msra.mxu0 0.0
    %548 = vmatpush.xpose.msra.mxu0 0.0
    %549 = vmatpush.xpose.msra.mxu0 0.0
    %550 = vmatpush.xpose.msra.mxu0 0.0
    %551 = vmatpush.xpose.msra.mxu0 %v534
    %552 = vmatmul.f32.gmra.mxu0 %v532
    %v553 = vpop.f32.mrf.mxu0
    %v554 = vadd.f32 0.0, %v553
    %555 = vdwg.mxu0
    %v556 = vsel %vm531, %v429, 0
    %v558 = vsel %vm531, %v459, 0
    %560 = vmatpush.xpose.msra.mxu0 0.0
    %561 = vmatpush.xpose.msra.mxu0 0.0
    %562 = vmatpush.xpose.msra.mxu0 0.0
    %563 = vmatpush.xpose.msra.mxu0 0.0
    %564 = vmatpush.xpose.msra.mxu0 0.0
    %565 = vmatpush.xpose.msra.mxu0 0.0
    %566 = vmatpush.xpose.msra.mxu0 0.0
    %567 = vmatpush.xpose.msra.mxu0 0.0
    %568 = vmatpush.xpose.msra.mxu0 0.0
    %569 = vmatpush.xpose.msra.mxu0 0.0
    %570 = vmatpush.xpose.msra.mxu0 0.0
    %571 = vmatpush.xpose.msra.mxu0 0.0
    %572 = vmatpush.xpose.msra.mxu0 0.0
    %573 = vmatpush.xpose.msra.mxu0 0.0
    %574 = vmatpush.xpose.msra.mxu0 0.0
    %575 = vmatpush.xpose.msra.mxu0 %v558
    %576 = vmatmul.f32.gmra.mxu0 %v556
    %v577 = vpop.f32.mrf.mxu0
    %v578 = vadd.f32 0.0, %v577
    %579 = vdwg.mxu0
    %v580 = vsel %vm531, %v431, 0
    %v582 = vsel %vm531, %v461, 0
    %584 = vmatpush.xpose.msra.mxu0 0.0
    %585 = vmatpush.xpose.msra.mxu0 0.0
    %586 = vmatpush.xpose.msra.mxu0 0.0
    %587 = vmatpush.xpose.msra.mxu0 0.0
    %588 = vmatpush.xpose.msra.mxu0 0.0
    %589 = vmatpush.xpose.msra.mxu0 0.0
    %590 = vmatpush.xpose.msra.mxu0 0.0
    %591 = vmatpush.xpose.msra.mxu0 0.0
    %592 = vmatpush.xpose.msra.mxu0 0.0
    %593 = vmatpush.xpose.msra.mxu0 0.0
    %594 = vmatpush.xpose.msra.mxu0 0.0
    %595 = vmatpush.xpose.msra.mxu0 0.0
    %596 = vmatpush.xpose.msra.mxu0 0.0
    %597 = vmatpush.xpose.msra.mxu0 0.0
    %598 = vmatpush.xpose.msra.mxu0 0.0
    %599 = vmatpush.xpose.msra.mxu0 %v582
    %600 = vmatmul.f32.gmra.mxu0 %v580
    %v601 = vpop.f32.mrf.mxu0
    %v602 = vadd.f32 0.0, %v601
    %603 = vdwg.mxu0
    %v604 = vsel %vm531, %v433, 0
    %v606 = vsel %vm531, %v463, 0
    %608 = vmatpush.xpose.msra.mxu0 0.0
    %609 = vmatpush.xpose.msra.mxu0 0.0
    %610 = vmatpush.xpose.msra.mxu0 0.0
    %611 = vmatpush.xpose.msra.mxu0 0.0
    %612 = vmatpush.xpose.msra.mxu0 0.0
    %613 = vmatpush.xpose.msra.mxu0 0.0
    %614 = vmatpush.xpose.msra.mxu0 0.0
    %615 = vmatpush.xpose.msra.mxu0 0.0
    %616 = vmatpush.xpose.msra.mxu0 0.0
    %617 = vmatpush.xpose.msra.mxu0 0.0
    %618 = vmatpush.xpose.msra.mxu0 0.0
    %619 = vmatpush.xpose.msra.mxu0 0.0
    %620 = vmatpush.xpose.msra.mxu0 0.0
    %621 = vmatpush.xpose.msra.mxu0 0.0
    %622 = vmatpush.xpose.msra.mxu0 0.0
    %623 = vmatpush.xpose.msra.mxu0 %v606
    %624 = vmatmul.f32.gmra.mxu0 %v604
    %v625 = vpop.f32.mrf.mxu0
    %v626 = vadd.f32 0.0, %v625
    %627 = vdwg.mxu0
    %v628 = vsel %vm531, %v435, 0
    %v630 = vsel %vm531, %v465, 0
    %632 = vmatpush.xpose.msra.mxu0 0.0
    %633 = vmatpush.xpose.msra.mxu0 0.0
    %634 = vmatpush.xpose.msra.mxu0 0.0
    %635 = vmatpush.xpose.msra.mxu0 0.0
    %636 = vmatpush.xpose.msra.mxu0 0.0
    %637 = vmatpush.xpose.msra.mxu0 0.0
    %638 = vmatpush.xpose.msra.mxu0 0.0
    %639 = vmatpush.xpose.msra.mxu0 0.0
    %640 = vmatpush.xpose.msra.mxu0 0.0
    %641 = vmatpush.xpose.msra.mxu0 0.0
    %642 = vmatpush.xpose.msra.mxu0 0.0
    %643 = vmatpush.xpose.msra.mxu0 0.0
    %644 = vmatpush.xpose.msra.mxu0 0.0
    %645 = vmatpush.xpose.msra.mxu0 0.0
    %646 = vmatpush.xpose.msra.mxu0 0.0
    %647 = vmatpush.xpose.msra.mxu0 %v630
    %648 = vmatmul.f32.gmra.mxu0 %v628
    %v649 = vpop.f32.mrf.mxu0
    %v650 = vadd.f32 0.0, %v649
    %651 = vdwg.mxu0
    %v652 = vsel %vm531, %v437, 0
    %v654 = vsel %vm531, %v467, 0
    %656 = vmatpush.xpose.msra.mxu0 0.0
    %657 = vmatpush.xpose.msra.mxu0 0.0
    %658 = vmatpush.xpose.msra.mxu0 0.0
    %659 = vmatpush.xpose.msra.mxu0 0.0
    %660 = vmatpush.xpose.msra.mxu0 0.0
    %661 = vmatpush.xpose.msra.mxu0 0.0
    %662 = vmatpush.xpose.msra.mxu0 0.0
    %663 = vmatpush.xpose.msra.mxu0 0.0
    %664 = vmatpush.xpose.msra.mxu0 0.0
    %665 = vmatpush.xpose.msra.mxu0 0.0
    %666 = vmatpush.xpose.msra.mxu0 0.0
    %667 = vmatpush.xpose.msra.mxu0 0.0
    %668 = vmatpush.xpose.msra.mxu0 0.0
    %669 = vmatpush.xpose.msra.mxu0 0.0
    %670 = vmatpush.xpose.msra.mxu0 0.0
    %671 = vmatpush.xpose.msra.mxu0 %v654
    %672 = vmatmul.f32.gmra.mxu0 %v652
    %v673 = vpop.f32.mrf.mxu0
    %v674 = vadd.f32 0.0, %v673
    %675 = vdwg.mxu0
    %v676 = vsel %vm531, %v439, 0
    %v678 = vsel %vm531, %v469, 0
    %680 = vmatpush.xpose.msra.mxu0 0.0
    %681 = vmatpush.xpose.msra.mxu0 0.0
    %682 = vmatpush.xpose.msra.mxu0 0.0
    %683 = vmatpush.xpose.msra.mxu0 0.0
    %684 = vmatpush.xpose.msra.mxu0 0.0
    %685 = vmatpush.xpose.msra.mxu0 0.0
    %686 = vmatpush.xpose.msra.mxu0 0.0
    %687 = vmatpush.xpose.msra.mxu0 0.0
    %688 = vmatpush.xpose.msra.mxu0 0.0
    %689 = vmatpush.xpose.msra.mxu0 0.0
    %690 = vmatpush.xpose.msra.mxu0 0.0
    %691 = vmatpush.xpose.msra.mxu0 0.0
    %692 = vmatpush.xpose.msra.mxu0 0.0
    %693 = vmatpush.xpose.msra.mxu0 0.0
    %694 = vmatpush.xpose.msra.mxu0 0.0
    %695 = vmatpush.xpose.msra.mxu0 %v678
    %696 = vmatmul.f32.gmra.mxu0 %v676
    %v697 = vpop.f32.mrf.mxu0
    %v698 = vadd.f32 0.0, %v697
    %699 = vdwg.mxu0
    %v700 = vsel %vm531, %v441, 0
    %v702 = vsel %vm531, %v471, 0
    %704 = vmatpush.xpose.msra.mxu0 0.0
    %705 = vmatpush.xpose.msra.mxu0 0.0
    %706 = vmatpush.xpose.msra.mxu0 0.0
    %707 = vmatpush.xpose.msra.mxu0 0.0
    %708 = vmatpush.xpose.msra.mxu0 0.0
    %709 = vmatpush.xpose.msra.mxu0 0.0
    %710 = vmatpush.xpose.msra.mxu0 0.0
    %711 = vmatpush.xpose.msra.mxu0 0.0
    %712 = vmatpush.xpose.msra.mxu0 0.0
    %713 = vmatpush.xpose.msra.mxu0 0.0
    %714 = vmatpush.xpose.msra.mxu0 0.0
    %715 = vmatpush.xpose.msra.mxu0 0.0
    %716 = vmatpush.xpose.msra.mxu0 0.0
    %717 = vmatpush.xpose.msra.mxu0 0.0
    %718 = vmatpush.xpose.msra.mxu0 0.0
    %719 = vmatpush.xpose.msra.mxu0 %v702
    %720 = vmatmul.f32.gmra.mxu0 %v700
    %v721 = vpop.f32.mrf.mxu0
    %v722 = vadd.f32 0.0, %v721
    %723 = vdwg.mxu0
    %v724 = vsel %vm531, %v426, 0
    %v726 = vsel %vm531, %v341, 0
    %728 = vmatpush.xpose.msra.mxu0 0.0
    %729 = vmatpush.xpose.msra.mxu0 0.0
    %730 = vmatpush.xpose.msra.mxu0 0.0
    %731 = vmatpush.xpose.msra.mxu0 0.0
    %732 = vmatpush.xpose.msra.mxu0 0.0
    %733 = vmatpush.xpose.msra.mxu0 0.0
    %734 = vmatpush.xpose.msra.mxu0 0.0
    %735 = vmatpush.xpose.msra.mxu0 0.0
    %736 = vmatpush.xpose.msra.mxu0 0.0
    %737 = vmatpush.xpose.msra.mxu0 0.0
    %738 = vmatpush.xpose.msra.mxu0 0.0
    %739 = vmatpush.xpose.msra.mxu0 0.0
    %740 = vmatpush.xpose.msra.mxu0 0.0
    %741 = vmatpush.xpose.msra.mxu0 0.0
    %742 = vmatpush.xpose.msra.mxu0 0.0
    %743 = vmatpush.xpose.msra.mxu0 %v726
    %744 = vmatmul.f32.gmra.mxu0 %v724
    %v745 = vpop.f32.mrf.mxu0
    %v746 = vadd.f32 0.0, %v745
    %747 = vdwg.mxu0
    %v748 = vsel %vm531, %v444, 0
    %v750 = vsel %vm531, %v474, 0
    %752 = vmatpush.xpose.msra.mxu0 0.0
    %753 = vmatpush.xpose.msra.mxu0 0.0
    %754 = vmatpush.xpose.msra.mxu0 0.0
    %755 = vmatpush.xpose.msra.mxu0 0.0
    %756 = vmatpush.xpose.msra.mxu0 0.0
    %757 = vmatpush.xpose.msra.mxu0 0.0
    %758 = vmatpush.xpose.msra.mxu0 0.0
    %759 = vmatpush.xpose.msra.mxu0 0.0
    %760 = vmatpush.xpose.msra.mxu0 0.0
    %761 = vmatpush.xpose.msra.mxu0 0.0
    %762 = vmatpush.xpose.msra.mxu0 0.0
    %763 = vmatpush.xpose.msra.mxu0 0.0
    %764 = vmatpush.xpose.msra.mxu0 0.0
    %765 = vmatpush.xpose.msra.mxu0 0.0
    %766 = vmatpush.xpose.msra.mxu0 0.0
    %767 = vmatpush.xpose.msra.mxu0 %v750
    %768 = vmatmul.f32.gmra.mxu0 %v748
    %v769 = vpop.f32.mrf.mxu0
    %v770 = vadd.f32 0.0, %v769
    %771 = vdwg.mxu0
    %v772 = vsel %vm531, %v446, 0
    %v774 = vsel %vm531, %v476, 0
    %776 = vmatpush.xpose.msra.mxu0 0.0
    %777 = vmatpush.xpose.msra.mxu0 0.0
    %778 = vmatpush.xpose.msra.mxu0 0.0
    %779 = vmatpush.xpose.msra.mxu0 0.0
    %780 = vmatpush.xpose.msra.mxu0 0.0
    %781 = vmatpush.xpose.msra.mxu0 0.0
    %782 = vmatpush.xpose.msra.mxu0 0.0
    %783 = vmatpush.xpose.msra.mxu0 0.0
    %784 = vmatpush.xpose.msra.mxu0 0.0
    %785 = vmatpush.xpose.msra.mxu0 0.0
    %786 = vmatpush.xpose.msra.mxu0 0.0
    %787 = vmatpush.xpose.msra.mxu0 0.0
    %788 = vmatpush.xpose.msra.mxu0 0.0
    %789 = vmatpush.xpose.msra.mxu0 0.0
    %790 = vmatpush.xpose.msra.mxu0 0.0
    %791 = vmatpush.xpose.msra.mxu0 %v774
    %792 = vmatmul.f32.gmra.mxu0 %v772
    %v793 = vpop.f32.mrf.mxu0
    %v794 = vadd.f32 0.0, %v793
    %795 = vdwg.mxu0
    %v796 = vsel %vm531, %v448, 0
    %v798 = vsel %vm531, %v478, 0
    %800 = vmatpush.xpose.msra.mxu0 0.0
    %801 = vmatpush.xpose.msra.mxu0 0.0
    %802 = vmatpush.xpose.msra.mxu0 0.0
    %803 = vmatpush.xpose.msra.mxu0 0.0
    %804 = vmatpush.xpose.msra.mxu0 0.0
    %805 = vmatpush.xpose.msra.mxu0 0.0
    %806 = vmatpush.xpose.msra.mxu0 0.0
    %807 = vmatpush.xpose.msra.mxu0 0.0
    %808 = vmatpush.xpose.msra.mxu0 0.0
    %809 = vmatpush.xpose.msra.mxu0 0.0
    %810 = vmatpush.xpose.msra.mxu0 0.0
    %811 = vmatpush.xpose.msra.mxu0 0.0
    %812 = vmatpush.xpose.msra.mxu0 0.0
    %813 = vmatpush.xpose.msra.mxu0 0.0
    %814 = vmatpush.xpose.msra.mxu0 0.0
    %815 = vmatpush.xpose.msra.mxu0 %v798
    %816 = vmatmul.f32.gmra.mxu0 %v796
    %v817 = vpop.f32.mrf.mxu0
    %v818 = vadd.f32 0.0, %v817
    %819 = vdwg.mxu0
    %v820 = vsel %vm531, %v450, 0
    %v822 = vsel %vm531, %v480, 0
    %824 = vmatpush.xpose.msra.mxu0 0.0
    %825 = vmatpush.xpose.msra.mxu0 0.0
    %826 = vmatpush.xpose.msra.mxu0 0.0
    %827 = vmatpush.xpose.msra.mxu0 0.0
    %828 = vmatpush.xpose.msra.mxu0 0.0
    %829 = vmatpush.xpose.msra.mxu0 0.0
    %830 = vmatpush.xpose.msra.mxu0 0.0
    %831 = vmatpush.xpose.msra.mxu0 0.0
    %832 = vmatpush.xpose.msra.mxu0 0.0
    %833 = vmatpush.xpose.msra.mxu0 0.0
    %834 = vmatpush.xpose.msra.mxu0 0.0
    %835 = vmatpush.xpose.msra.mxu0 0.0
    %836 = vmatpush.xpose.msra.mxu0 0.0
    %837 = vmatpush.xpose.msra.mxu0 0.0
    %838 = vmatpush.xpose.msra.mxu0 0.0
    %839 = vmatpush.xpose.msra.mxu0 %v822
    %840 = vmatmul.f32.gmra.mxu0 %v820
    %v841 = vpop.f32.mrf.mxu0
    %v842 = vadd.f32 0.0, %v841
    %843 = vdwg.mxu0
    %v844 = vsel %vm531, %v452, 0
    %v846 = vsel %vm531, %v482, 0
    %848 = vmatpush.xpose.msra.mxu0 0.0
    %849 = vmatpush.xpose.msra.mxu0 0.0
    %850 = vmatpush.xpose.msra.mxu0 0.0
    %851 = vmatpush.xpose.msra.mxu0 0.0
    %852 = vmatpush.xpose.msra.mxu0 0.0
    %853 = vmatpush.xpose.msra.mxu0 0.0
    %854 = vmatpush.xpose.msra.mxu0 0.0
    %855 = vmatpush.xpose.msra.mxu0 0.0
    %856 = vmatpush.xpose.msra.mxu0 0.0
    %857 = vmatpush.xpose.msra.mxu0 0.0
    %858 = vmatpush.xpose.msra.mxu0 0.0
    %859 = vmatpush.xpose.msra.mxu0 0.0
    %860 = vmatpush.xpose.msra.mxu0 0.0
    %861 = vmatpush.xpose.msra.mxu0 0.0
    %862 = vmatpush.xpose.msra.mxu0 0.0
    %863 = vmatpush.xpose.msra.mxu0 %v846
    %864 = vmatmul.f32.gmra.mxu0 %v844
    %v865 = vpop.f32.mrf.mxu0
    %v866 = vadd.f32 0.0, %v865
    %867 = vdwg.mxu0
    %v868 = vsel %vm531, %v454, 0
    %v870 = vsel %vm531, %v484, 0
    %872 = vmatpush.xpose.msra.mxu0 0.0
    %873 = vmatpush.xpose.msra.mxu0 0.0
    %874 = vmatpush.xpose.msra.mxu0 0.0
    %875 = vmatpush.xpose.msra.mxu0 0.0
    %876 = vmatpush.xpose.msra.mxu0 0.0
    %877 = vmatpush.xpose.msra.mxu0 0.0
    %878 = vmatpush.xpose.msra.mxu0 0.0
    %879 = vmatpush.xpose.msra.mxu0 0.0
    %880 = vmatpush.xpose.msra.mxu0 0.0
    %881 = vmatpush.xpose.msra.mxu0 0.0
    %882 = vmatpush.xpose.msra.mxu0 0.0
    %883 = vmatpush.xpose.msra.mxu0 0.0
    %884 = vmatpush.xpose.msra.mxu0 0.0
    %885 = vmatpush.xpose.msra.mxu0 0.0
    %886 = vmatpush.xpose.msra.mxu0 0.0
    %887 = vmatpush.xpose.msra.mxu0 %v870
    %888 = vmatmul.f32.gmra.mxu0 %v868
    %v889 = vpop.f32.mrf.mxu0
    %v890 = vadd.f32 0.0, %v889
    %891 = vdwg.mxu0
    %v892 = vsel %vm531, %v456, 0
    %v894 = vsel %vm531, %v486, 0
    %896 = vmatpush.xpose.msra.mxu0 0.0
    %897 = vmatpush.xpose.msra.mxu0 0.0
    %898 = vmatpush.xpose.msra.mxu0 0.0
    %899 = vmatpush.xpose.msra.mxu0 0.0
    %900 = vmatpush.xpose.msra.mxu0 0.0
    %901 = vmatpush.xpose.msra.mxu0 0.0
    %902 = vmatpush.xpose.msra.mxu0 0.0
    %903 = vmatpush.xpose.msra.mxu0 0.0
    %904 = vmatpush.xpose.msra.mxu0 0.0
    %905 = vmatpush.xpose.msra.mxu0 0.0
    %906 = vmatpush.xpose.msra.mxu0 0.0
    %907 = vmatpush.xpose.msra.mxu0 0.0
    %908 = vmatpush.xpose.msra.mxu0 0.0
    %909 = vmatpush.xpose.msra.mxu0 0.0
    %910 = vmatpush.xpose.msra.mxu0 0.0
    %911 = vmatpush.xpose.msra.mxu0 %v894
    %912 = vmatmul.f32.gmra.mxu0 %v892
    %v913 = vpop.f32.mrf.mxu0
    %v914 = vadd.f32 0.0, %v913
    %915 = vdwg.mxu0
    %vm916 = vcmask 64512
    %v917 = vsel %vm916, %v554, -inf
    %918 = vmax.xlane.f32.xlu0 %v917
    %v919 = vpop.xlane.xlu0 %918
    %v920 = vsel %vm916, %v578, -inf
    %921 = vmax.xlane.f32.xlu0 %v920
    %v922 = vpop.xlane.xlu0 %921
    %v923 = vsel %vm916, %v602, -inf
    %924 = vmax.xlane.f32.xlu0 %v923
    %v925 = vpop.xlane.xlu0 %924
    %v926 = vsel %vm916, %v626, -inf
    %927 = vmax.xlane.f32.xlu0 %v926
    %v928 = vpop.xlane.xlu0 %927
    %v929 = vsel %vm916, %v650, -inf
    %930 = vmax.xlane.f32.xlu0 %v929
    %v931 = vpop.xlane.xlu0 %930
    %v932 = vsel %vm916, %v674, -inf
    %933 = vmax.xlane.f32.xlu0 %v932
    %v934 = vpop.xlane.xlu0 %933
    %v935 = vsel %vm916, %v698, -inf
    %936 = vmax.xlane.f32.xlu0 %v935
    %v937 = vpop.xlane.xlu0 %936
    %v938 = vsel %vm916, %v722, -inf
    %939 = vmax.xlane.f32.xlu0 %v938
    %v940 = vpop.xlane.xlu0 %939
    %v941 = vsel %vm916, %v746, -inf
    %942 = vmax.xlane.f32.xlu0 %v941
    %v943 = vpop.xlane.xlu0 %942
    %v944 = vsel %vm916, %v770, -inf
    %945 = vmax.xlane.f32.xlu0 %v944
    %v946 = vpop.xlane.xlu0 %945
    %v947 = vsel %vm916, %v794, -inf
    %948 = vmax.xlane.f32.xlu0 %v947
    %v949 = vpop.xlane.xlu0 %948
    %v950 = vsel %vm916, %v818, -inf
    %951 = vmax.xlane.f32.xlu0 %v950
    %v952 = vpop.xlane.xlu0 %951
    %v953 = vsel %vm916, %v842, -inf
    %954 = vmax.xlane.f32.xlu0 %v953
    %v955 = vpop.xlane.xlu0 %954
    %v956 = vsel %vm916, %v866, -inf
    %957 = vmax.xlane.f32.xlu0 %v956
    %v958 = vpop.xlane.xlu0 %957
    %v959 = vsel %vm916, %v890, -inf
    %960 = vmax.xlane.f32.xlu0 %v959
    %v961 = vpop.xlane.xlu0 %960
    %v962 = vsel %vm916, %v914, -inf
    %963 = vmax.xlane.f32.xlu0 %v962
    %v964 = vpop.xlane.xlu0 %963
    %v965 = vsub.f32 %v554, %v919
    %v966 = vsub.f32 %v578, %v922
    %v967 = vsub.f32 %v602, %v925
    %v968 = vsub.f32 %v626, %v928
    %v969 = vsub.f32 %v650, %v931
    %v970 = vsub.f32 %v674, %v934
    %v971 = vsub.f32 %v698, %v937
    %v972 = vsub.f32 %v722, %v940
    %v973 = vsub.f32 %v746, %v943
    %v974 = vsub.f32 %v770, %v946
    %v975 = vsub.f32 %v794, %v949
    %v976 = vsub.f32 %v818, %v952
    %v977 = vsub.f32 %v842, %v955
    %v978 = vsub.f32 %v866, %v958
    %v979 = vsub.f32 %v890, %v961
    %v980 = vsub.f32 %v914, %v964
    %v981 = vmul.f32 %v965, 1.442695
    %v982 = vpow.pop %v981
    %v983 = vmul.f32 %v966, 1.442695
    %v984 = vpow.pop %v983
    %v985 = vmul.f32 %v967, 1.442695
    %v986 = vpow.pop %v985
    %v987 = vmul.f32 %v968, 1.442695
    %v988 = vpow.pop %v987
    %v989 = vmul.f32 %v969, 1.442695
    %v990 = vpow.pop %v989
    %v991 = vmul.f32 %v970, 1.442695
    %v992 = vpow.pop %v991
    %v993 = vmul.f32 %v971, 1.442695
    %v994 = vpow.pop %v993
    %v995 = vmul.f32 %v972, 1.442695
    %v996 = vpow.pop %v995
    %v997 = vmul.f32 %v973, 1.442695
    %v998 = vpow.pop %v997
    %v999 = vmul.f32 %v974, 1.442695
    %v1000 = vpow.pop %v999
    %v1001 = vmul.f32 %v975, 1.442695
    %v1002 = vpow.pop %v1001
    %v1003 = vmul.f32 %v976, 1.442695
    %v1004 = vpow.pop %v1003
    %v1005 = vmul.f32 %v977, 1.442695
    %v1006 = vpow.pop %v1005
    %v1007 = vmul.f32 %v978, 1.442695
    %v1008 = vpow.pop %v1007
    %v1009 = vmul.f32 %v979, 1.442695
    %v1010 = vpow.pop %v1009
    %v1011 = vmul.f32 %v980, 1.442695
    %v1012 = vpow.pop %v1011
    %v1013 = vsel %vm916, %v982, 0.0
    %1014 = vadd.xlane.f32.xlu0 %v1013
    %v1015 = vpop.xlane.xlu0 %1014
    %v1016 = vsel %vm916, %v984, 0.0
    %1017 = vadd.xlane.f32.xlu0 %v1016
    %v1018 = vpop.xlane.xlu0 %1017
    %v1019 = vsel %vm916, %v986, 0.0
    %1020 = vadd.xlane.f32.xlu0 %v1019
    %v1021 = vpop.xlane.xlu0 %1020
    %v1022 = vsel %vm916, %v988, 0.0
    %1023 = vadd.xlane.f32.xlu0 %v1022
    %v1024 = vpop.xlane.xlu0 %1023
    %v1025 = vsel %vm916, %v990, 0.0
    %1026 = vadd.xlane.f32.xlu0 %v1025
    %v1027 = vpop.xlane.xlu0 %1026
    %v1028 = vsel %vm916, %v992, 0.0
    %1029 = vadd.xlane.f32.xlu0 %v1028
    %v1030 = vpop.xlane.xlu0 %1029
    %v1031 = vsel %vm916, %v994, 0.0
    %1032 = vadd.xlane.f32.xlu0 %v1031
    %v1033 = vpop.xlane.xlu0 %1032
    %v1034 = vsel %vm916, %v996, 0.0
    %1035 = vadd.xlane.f32.xlu0 %v1034
    %v1036 = vpop.xlane.xlu0 %1035
    %v1037 = vsel %vm916, %v998, 0.0
    %1038 = vadd.xlane.f32.xlu0 %v1037
    %v1039 = vpop.xlane.xlu0 %1038
    %v1040 = vsel %vm916, %v1000, 0.0
    %1041 = vadd.xlane.f32.xlu0 %v1040
    %v1042 = vpop.xlane.xlu0 %1041
    %v1043 = vsel %vm916, %v1002, 0.0
    %1044 = vadd.xlane.f32.xlu0 %v1043
    %v1045 = vpop.xlane.xlu0 %1044
    %v1046 = vsel %vm916, %v1004, 0.0
    %1047 = vadd.xlane.f32.xlu0 %v1046
    %v1048 = vpop.xlane.xlu0 %1047
    %v1049 = vsel %vm916, %v1006, 0.0
    %1050 = vadd.xlane.f32.xlu0 %v1049
    %v1051 = vpop.xlane.xlu0 %1050
    %v1052 = vsel %vm916, %v1008, 0.0
    %1053 = vadd.xlane.f32.xlu0 %v1052
    %v1054 = vpop.xlane.xlu0 %1053
    %v1055 = vsel %vm916, %v1010, 0.0
    %1056 = vadd.xlane.f32.xlu0 %v1055
    %v1057 = vpop.xlane.xlu0 %1056
    %v1058 = vsel %vm916, %v1012, 0.0
    %1059 = vadd.xlane.f32.xlu0 %v1058
    %v1060 = vpop.xlane.xlu0 %1059
    %v1061 = vrcp.pop %v1015
    %v1062 = vrcp.pop %v1018
    %v1063 = vrcp.pop %v1021
    %v1064 = vrcp.pop %v1024
    %v1065 = vrcp.pop %v1027
    %v1066 = vrcp.pop %v1030
    %v1067 = vrcp.pop %v1033
    %v1068 = vrcp.pop %v1036
    %v1069 = vrcp.pop %v1039
    %v1070 = vrcp.pop %v1042
    %v1071 = vrcp.pop %v1045
    %v1072 = vrcp.pop %v1048
    %v1073 = vrcp.pop %v1051
    %v1074 = vrcp.pop %v1054
    %v1075 = vrcp.pop %v1057
    %v1076 = vrcp.pop %v1060
    %v1077 = vmul.f32 %v982, %v1061
    %v1078 = vmul.f32 %v984, %v1062
    %v1079 = vmul.f32 %v986, %v1063
    %v1080 = vmul.f32 %v988, %v1064
    %v1081 = vmul.f32 %v990, %v1065
    %v1082 = vmul.f32 %v992, %v1066
    %v1083 = vmul.f32 %v994, %v1067
    %v1084 = vmul.f32 %v996, %v1068
    %v1085 = vmul.f32 %v998, %v1069
    %v1086 = vmul.f32 %v1000, %v1070
    %v1087 = vmul.f32 %v1002, %v1071
    %v1088 = vmul.f32 %v1004, %v1072
    %v1089 = vmul.f32 %v1006, %v1073
    %v1090 = vmul.f32 %v1008, %v1074
    %v1091 = vmul.f32 %v1010, %v1075
    %v1092 = vmul.f32 %v1012, %v1076
    %v1094 = vsel %vm916, %v1077, 0
    %1096 = vmatpush.msra.mxu0 0.0
    %1097 = vmatpush.msra.mxu0 0.0
    %1098 = vmatpush.msra.mxu0 0.0
    %1099 = vmatpush.msra.mxu0 0.0
    %1100 = vmatpush.msra.mxu0 0.0
    %1101 = vmatpush.msra.mxu0 0.0
    %1102 = vmatpush.msra.mxu0 0.0
    %1103 = vmatpush.msra.mxu0 0.0
    %1104 = vmatpush.msra.mxu0 0.0
    %1105 = vmatpush.msra.mxu0 0.0
    %1106 = vmatpush.msra.mxu0 0.0
    %1107 = vmatpush.msra.mxu0 0.0
    %1108 = vmatpush.msra.mxu0 0.0
    %1109 = vmatpush.msra.mxu0 0.0
    %1110 = vmatpush.msra.mxu0 0.0
    %1111 = vmatpush.msra.mxu0 %v421
    %1112 = vmatmul.f32.gmra.mxu0 %v1094
    %v1113 = vpop.f32.mrf.mxu0
    %v1114 = vadd.f32 0.0, %v1113
    %1115 = vdwg.mxu0
    %v1117 = vsel %vm916, %v1078, 0
    %1119 = vmatpush.msra.mxu0 0.0
    %1120 = vmatpush.msra.mxu0 0.0
    %1121 = vmatpush.msra.mxu0 0.0
    %1122 = vmatpush.msra.mxu0 0.0
    %1123 = vmatpush.msra.mxu0 0.0
    %1124 = vmatpush.msra.mxu0 0.0
    %1125 = vmatpush.msra.mxu0 0.0
    %1126 = vmatpush.msra.mxu0 0.0
    %1127 = vmatpush.msra.mxu0 0.0
    %1128 = vmatpush.msra.mxu0 0.0
    %1129 = vmatpush.msra.mxu0 0.0
    %1130 = vmatpush.msra.mxu0 0.0
    %1131 = vmatpush.msra.mxu0 0.0
    %1132 = vmatpush.msra.mxu0 0.0
    %1133 = vmatpush.msra.mxu0 0.0
    %1134 = vmatpush.msra.mxu0 %v489
    %1135 = vmatmul.f32.gmra.mxu0 %v1117
    %v1136 = vpop.f32.mrf.mxu0
    %v1137 = vadd.f32 0.0, %v1136
    %1138 = vdwg.mxu0
    %v1140 = vsel %vm916, %v1079, 0
    %1142 = vmatpush.msra.mxu0 0.0
    %1143 = vmatpush.msra.mxu0 0.0
    %1144 = vmatpush.msra.mxu0 0.0
    %1145 = vmatpush.msra.mxu0 0.0
    %1146 = vmatpush.msra.mxu0 0.0
    %1147 = vmatpush.msra.mxu0 0.0
    %1148 = vmatpush.msra.mxu0 0.0
    %1149 = vmatpush.msra.mxu0 0.0
    %1150 = vmatpush.msra.mxu0 0.0
    %1151 = vmatpush.msra.mxu0 0.0
    %1152 = vmatpush.msra.mxu0 0.0
    %1153 = vmatpush.msra.mxu0 0.0
    %1154 = vmatpush.msra.mxu0 0.0
    %1155 = vmatpush.msra.mxu0 0.0
    %1156 = vmatpush.msra.mxu0 0.0
    %1157 = vmatpush.msra.mxu0 %v492
    %1158 = vmatmul.f32.gmra.mxu0 %v1140
    %v1159 = vpop.f32.mrf.mxu0
    %v1160 = vadd.f32 0.0, %v1159
    %1161 = vdwg.mxu0
    %v1163 = vsel %vm916, %v1080, 0
    %1165 = vmatpush.msra.mxu0 0.0
    %1166 = vmatpush.msra.mxu0 0.0
    %1167 = vmatpush.msra.mxu0 0.0
    %1168 = vmatpush.msra.mxu0 0.0
    %1169 = vmatpush.msra.mxu0 0.0
    %1170 = vmatpush.msra.mxu0 0.0
    %1171 = vmatpush.msra.mxu0 0.0
    %1172 = vmatpush.msra.mxu0 0.0
    %1173 = vmatpush.msra.mxu0 0.0
    %1174 = vmatpush.msra.mxu0 0.0
    %1175 = vmatpush.msra.mxu0 0.0
    %1176 = vmatpush.msra.mxu0 0.0
    %1177 = vmatpush.msra.mxu0 0.0
    %1178 = vmatpush.msra.mxu0 0.0
    %1179 = vmatpush.msra.mxu0 0.0
    %1180 = vmatpush.msra.mxu0 %v495
    %1181 = vmatmul.f32.gmra.mxu0 %v1163
    %v1182 = vpop.f32.mrf.mxu0
    %v1183 = vadd.f32 0.0, %v1182
    %1184 = vdwg.mxu0
    %v1186 = vsel %vm916, %v1081, 0
    %1188 = vmatpush.msra.mxu0 0.0
    %1189 = vmatpush.msra.mxu0 0.0
    %1190 = vmatpush.msra.mxu0 0.0
    %1191 = vmatpush.msra.mxu0 0.0
    %1192 = vmatpush.msra.mxu0 0.0
    %1193 = vmatpush.msra.mxu0 0.0
    %1194 = vmatpush.msra.mxu0 0.0
    %1195 = vmatpush.msra.mxu0 0.0
    %1196 = vmatpush.msra.mxu0 0.0
    %1197 = vmatpush.msra.mxu0 0.0
    %1198 = vmatpush.msra.mxu0 0.0
    %1199 = vmatpush.msra.mxu0 0.0
    %1200 = vmatpush.msra.mxu0 0.0
    %1201 = vmatpush.msra.mxu0 0.0
    %1202 = vmatpush.msra.mxu0 0.0
    %1203 = vmatpush.msra.mxu0 %v498
    %1204 = vmatmul.f32.gmra.mxu0 %v1186
    %v1205 = vpop.f32.mrf.mxu0
    %v1206 = vadd.f32 0.0, %v1205
    %1207 = vdwg.mxu0
    %v1209 = vsel %vm916, %v1082, 0
    %1211 = vmatpush.msra.mxu0 0.0
    %1212 = vmatpush.msra.mxu0 0.0
    %1213 = vmatpush.msra.mxu0 0.0
    %1214 = vmatpush.msra.mxu0 0.0
    %1215 = vmatpush.msra.mxu0 0.0
    %1216 = vmatpush.msra.mxu0 0.0
    %1217 = vmatpush.msra.mxu0 0.0
    %1218 = vmatpush.msra.mxu0 0.0
    %1219 = vmatpush.msra.mxu0 0.0
    %1220 = vmatpush.msra.mxu0 0.0
    %1221 = vmatpush.msra.mxu0 0.0
    %1222 = vmatpush.msra.mxu0 0.0
    %1223 = vmatpush.msra.mxu0 0.0
    %1224 = vmatpush.msra.mxu0 0.0
    %1225 = vmatpush.msra.mxu0 0.0
    %1226 = vmatpush.msra.mxu0 %v501
    %1227 = vmatmul.f32.gmra.mxu0 %v1209
    %v1228 = vpop.f32.mrf.mxu0
    %v1229 = vadd.f32 0.0, %v1228
    %1230 = vdwg.mxu0
    %v1232 = vsel %vm916, %v1083, 0
    %1234 = vmatpush.msra.mxu0 0.0
    %1235 = vmatpush.msra.mxu0 0.0
    %1236 = vmatpush.msra.mxu0 0.0
    %1237 = vmatpush.msra.mxu0 0.0
    %1238 = vmatpush.msra.mxu0 0.0
    %1239 = vmatpush.msra.mxu0 0.0
    %1240 = vmatpush.msra.mxu0 0.0
    %1241 = vmatpush.msra.mxu0 0.0
    %1242 = vmatpush.msra.mxu0 0.0
    %1243 = vmatpush.msra.mxu0 0.0
    %1244 = vmatpush.msra.mxu0 0.0
    %1245 = vmatpush.msra.mxu0 0.0
    %1246 = vmatpush.msra.mxu0 0.0
    %1247 = vmatpush.msra.mxu0 0.0
    %1248 = vmatpush.msra.mxu0 0.0
    %1249 = vmatpush.msra.mxu0 %v504
    %1250 = vmatmul.f32.gmra.mxu0 %v1232
    %v1251 = vpop.f32.mrf.mxu0
    %v1252 = vadd.f32 0.0, %v1251
    %1253 = vdwg.mxu0
    %v1255 = vsel %vm916, %v1084, 0
    %1257 = vmatpush.msra.mxu0 0.0
    %1258 = vmatpush.msra.mxu0 0.0
    %1259 = vmatpush.msra.mxu0 0.0
    %1260 = vmatpush.msra.mxu0 0.0
    %1261 = vmatpush.msra.mxu0 0.0
    %1262 = vmatpush.msra.mxu0 0.0
    %1263 = vmatpush.msra.mxu0 0.0
    %1264 = vmatpush.msra.mxu0 0.0
    %1265 = vmatpush.msra.mxu0 0.0
    %1266 = vmatpush.msra.mxu0 0.0
    %1267 = vmatpush.msra.mxu0 0.0
    %1268 = vmatpush.msra.mxu0 0.0
    %1269 = vmatpush.msra.mxu0 0.0
    %1270 = vmatpush.msra.mxu0 0.0
    %1271 = vmatpush.msra.mxu0 0.0
    %1272 = vmatpush.msra.mxu0 %v507
    %1273 = vmatmul.f32.gmra.mxu0 %v1255
    %v1274 = vpop.f32.mrf.mxu0
    %v1275 = vadd.f32 0.0, %v1274
    %1276 = vdwg.mxu0
    %v1278 = vsel %vm916, %v1085, 0
    %1280 = vmatpush.msra.mxu0 0.0
    %1281 = vmatpush.msra.mxu0 0.0
    %1282 = vmatpush.msra.mxu0 0.0
    %1283 = vmatpush.msra.mxu0 0.0
    %1284 = vmatpush.msra.mxu0 0.0
    %1285 = vmatpush.msra.mxu0 0.0
    %1286 = vmatpush.msra.mxu0 0.0
    %1287 = vmatpush.msra.mxu0 0.0
    %1288 = vmatpush.msra.mxu0 0.0
    %1289 = vmatpush.msra.mxu0 0.0
    %1290 = vmatpush.msra.mxu0 0.0
    %1291 = vmatpush.msra.mxu0 0.0
    %1292 = vmatpush.msra.mxu0 0.0
    %1293 = vmatpush.msra.mxu0 0.0
    %1294 = vmatpush.msra.mxu0 0.0
    %1295 = vmatpush.msra.mxu0 %v423
    %1296 = vmatmul.f32.gmra.mxu0 %v1278
    %v1297 = vpop.f32.mrf.mxu0
    %v1298 = vadd.f32 0.0, %v1297
    %1299 = vdwg.mxu0
    %v1301 = vsel %vm916, %v1086, 0
    %1303 = vmatpush.msra.mxu0 0.0
    %1304 = vmatpush.msra.mxu0 0.0
    %1305 = vmatpush.msra.mxu0 0.0
    %1306 = vmatpush.msra.mxu0 0.0
    %1307 = vmatpush.msra.mxu0 0.0
    %1308 = vmatpush.msra.mxu0 0.0
    %1309 = vmatpush.msra.mxu0 0.0
    %1310 = vmatpush.msra.mxu0 0.0
    %1311 = vmatpush.msra.mxu0 0.0
    %1312 = vmatpush.msra.mxu0 0.0
    %1313 = vmatpush.msra.mxu0 0.0
    %1314 = vmatpush.msra.mxu0 0.0
    %1315 = vmatpush.msra.mxu0 0.0
    %1316 = vmatpush.msra.mxu0 0.0
    %1317 = vmatpush.msra.mxu0 0.0
    %1318 = vmatpush.msra.mxu0 %v511
    %1319 = vmatmul.f32.gmra.mxu0 %v1301
    %v1320 = vpop.f32.mrf.mxu0
    %v1321 = vadd.f32 0.0, %v1320
    %1322 = vdwg.mxu0
    %v1324 = vsel %vm916, %v1087, 0
    %1326 = vmatpush.msra.mxu0 0.0
    %1327 = vmatpush.msra.mxu0 0.0
    %1328 = vmatpush.msra.mxu0 0.0
    %1329 = vmatpush.msra.mxu0 0.0
    %1330 = vmatpush.msra.mxu0 0.0
    %1331 = vmatpush.msra.mxu0 0.0
    %1332 = vmatpush.msra.mxu0 0.0
    %1333 = vmatpush.msra.mxu0 0.0
    %1334 = vmatpush.msra.mxu0 0.0
    %1335 = vmatpush.msra.mxu0 0.0
    %1336 = vmatpush.msra.mxu0 0.0
    %1337 = vmatpush.msra.mxu0 0.0
    %1338 = vmatpush.msra.mxu0 0.0
    %1339 = vmatpush.msra.mxu0 0.0
    %1340 = vmatpush.msra.mxu0 0.0
    %1341 = vmatpush.msra.mxu0 %v514
    %1342 = vmatmul.f32.gmra.mxu0 %v1324
    %v1343 = vpop.f32.mrf.mxu0
    %v1344 = vadd.f32 0.0, %v1343
    %1345 = vdwg.mxu0
    %v1347 = vsel %vm916, %v1088, 0
    %1349 = vmatpush.msra.mxu0 0.0
    %1350 = vmatpush.msra.mxu0 0.0
    %1351 = vmatpush.msra.mxu0 0.0
    %1352 = vmatpush.msra.mxu0 0.0
    %1353 = vmatpush.msra.mxu0 0.0
    %1354 = vmatpush.msra.mxu0 0.0
    %1355 = vmatpush.msra.mxu0 0.0
    %1356 = vmatpush.msra.mxu0 0.0
    %1357 = vmatpush.msra.mxu0 0.0
    %1358 = vmatpush.msra.mxu0 0.0
    %1359 = vmatpush.msra.mxu0 0.0
    %1360 = vmatpush.msra.mxu0 0.0
    %1361 = vmatpush.msra.mxu0 0.0
    %1362 = vmatpush.msra.mxu0 0.0
    %1363 = vmatpush.msra.mxu0 0.0
    %1364 = vmatpush.msra.mxu0 %v517
    %1365 = vmatmul.f32.gmra.mxu0 %v1347
    %v1366 = vpop.f32.mrf.mxu0
    %v1367 = vadd.f32 0.0, %v1366
    %1368 = vdwg.mxu0
    %v1370 = vsel %vm916, %v1089, 0
    %1372 = vmatpush.msra.mxu0 0.0
    %1373 = vmatpush.msra.mxu0 0.0
    %1374 = vmatpush.msra.mxu0 0.0
    %1375 = vmatpush.msra.mxu0 0.0
    %1376 = vmatpush.msra.mxu0 0.0
    %1377 = vmatpush.msra.mxu0 0.0
    %1378 = vmatpush.msra.mxu0 0.0
    %1379 = vmatpush.msra.mxu0 0.0
    %1380 = vmatpush.msra.mxu0 0.0
    %1381 = vmatpush.msra.mxu0 0.0
    %1382 = vmatpush.msra.mxu0 0.0
    %1383 = vmatpush.msra.mxu0 0.0
    %1384 = vmatpush.msra.mxu0 0.0
    %1385 = vmatpush.msra.mxu0 0.0
    %1386 = vmatpush.msra.mxu0 0.0
    %1387 = vmatpush.msra.mxu0 %v520
    %1388 = vmatmul.f32.gmra.mxu0 %v1370
    %v1389 = vpop.f32.mrf.mxu0
    %v1390 = vadd.f32 0.0, %v1389
    %1391 = vdwg.mxu0
    %v1393 = vsel %vm916, %v1090, 0
    %1395 = vmatpush.msra.mxu0 0.0
    %1396 = vmatpush.msra.mxu0 0.0
    %1397 = vmatpush.msra.mxu0 0.0
    %1398 = vmatpush.msra.mxu0 0.0
    %1399 = vmatpush.msra.mxu0 0.0
    %1400 = vmatpush.msra.mxu0 0.0
    %1401 = vmatpush.msra.mxu0 0.0
    %1402 = vmatpush.msra.mxu0 0.0
    %1403 = vmatpush.msra.mxu0 0.0
    %1404 = vmatpush.msra.mxu0 0.0
    %1405 = vmatpush.msra.mxu0 0.0
    %1406 = vmatpush.msra.mxu0 0.0
    %1407 = vmatpush.msra.mxu0 0.0
    %1408 = vmatpush.msra.mxu0 0.0
    %1409 = vmatpush.msra.mxu0 0.0
    %1410 = vmatpush.msra.mxu0 %v523
    %1411 = vmatmul.f32.gmra.mxu0 %v1393
    %v1412 = vpop.f32.mrf.mxu0
    %v1413 = vadd.f32 0.0, %v1412
    %1414 = vdwg.mxu0
    %v1416 = vsel %vm916, %v1091, 0
    %1418 = vmatpush.msra.mxu0 0.0
    %1419 = vmatpush.msra.mxu0 0.0
    %1420 = vmatpush.msra.mxu0 0.0
    %1421 = vmatpush.msra.mxu0 0.0
    %1422 = vmatpush.msra.mxu0 0.0
    %1423 = vmatpush.msra.mxu0 0.0
    %1424 = vmatpush.msra.mxu0 0.0
    %1425 = vmatpush.msra.mxu0 0.0
    %1426 = vmatpush.msra.mxu0 0.0
    %1427 = vmatpush.msra.mxu0 0.0
    %1428 = vmatpush.msra.mxu0 0.0
    %1429 = vmatpush.msra.mxu0 0.0
    %1430 = vmatpush.msra.mxu0 0.0
    %1431 = vmatpush.msra.mxu0 0.0
    %1432 = vmatpush.msra.mxu0 0.0
    %1433 = vmatpush.msra.mxu0 %v526
    %1434 = vmatmul.f32.gmra.mxu0 %v1416
    %v1435 = vpop.f32.mrf.mxu0
    %v1436 = vadd.f32 0.0, %v1435
    %1437 = vdwg.mxu0
    %v1439 = vsel %vm916, %v1092, 0
    %1441 = vmatpush.msra.mxu0 0.0
    %1442 = vmatpush.msra.mxu0 0.0
    %1443 = vmatpush.msra.mxu0 0.0
    %1444 = vmatpush.msra.mxu0 0.0
    %1445 = vmatpush.msra.mxu0 0.0
    %1446 = vmatpush.msra.mxu0 0.0
    %1447 = vmatpush.msra.mxu0 0.0
    %1448 = vmatpush.msra.mxu0 0.0
    %1449 = vmatpush.msra.mxu0 0.0
    %1450 = vmatpush.msra.mxu0 0.0
    %1451 = vmatpush.msra.mxu0 0.0
    %1452 = vmatpush.msra.mxu0 0.0
    %1453 = vmatpush.msra.mxu0 0.0
    %1454 = vmatpush.msra.mxu0 0.0
    %1455 = vmatpush.msra.mxu0 0.0
    %1456 = vmatpush.msra.mxu0 %v529
    %1457 = vmatmul.f32.gmra.mxu0 %v1439
    %v1458 = vpop.f32.mrf.mxu0
    %v1459 = vadd.f32 0.0, %v1458
    %1460 = vdwg.mxu0
    %1462 = vrot.lane.b32.xlu0 %v1137, 16
    %v1463 = vpop.permute.xlu0 %1462
    %1466 = vrot.lane.b32.xlu0 %v1160, 32
    %v1467 = vpop.permute.xlu0 %1466
    %1470 = vrot.lane.b32.xlu0 %v1183, 48
    %v1471 = vpop.permute.xlu0 %1470
    %1474 = vrot.lane.b32.xlu0 %v1206, 64
    %v1475 = vpop.permute.xlu0 %1474
    %1478 = vrot.lane.b32.xlu0 %v1229, 80
    %v1479 = vpop.permute.xlu0 %1478
    %1482 = vrot.lane.b32.xlu0 %v1252, 96
    %v1483 = vpop.permute.xlu0 %1482
    %1486 = vrot.lane.b32.xlu0 %v1275, 112
    %v1487 = vpop.permute.xlu0 %1486
    %v1489 = vsel %vm531, %v1114, %v1463
    %vm1490 = vcmask 261120
    %v1491 = vsel %vm1490, %v1489, %v1467
    %vm1492 = vcmask 392192
    %v1493 = vsel %vm1492, %v1491, %v1471
    %vm1494 = vcmask 523264
    %v1495 = vsel %vm1494, %v1493, %v1475
    %vm1496 = vcmask 654336
    %v1497 = vsel %vm1496, %v1495, %v1479
    %vm1498 = vcmask 785408
    %v1499 = vsel %vm1498, %v1497, %v1483
    %vm1500 = vcmask 916480
    %v1501 = vsel %vm1500, %v1499, %v1487
    %1503 = vrot.lane.b32.xlu0 %v1321, 16
    %v1504 = vpop.permute.xlu0 %1503
    %1507 = vrot.lane.b32.xlu0 %v1344, 32
    %v1508 = vpop.permute.xlu0 %1507
    %1511 = vrot.lane.b32.xlu0 %v1367, 48
    %v1512 = vpop.permute.xlu0 %1511
    %1515 = vrot.lane.b32.xlu0 %v1390, 64
    %v1516 = vpop.permute.xlu0 %1515
    %1519 = vrot.lane.b32.xlu0 %v1413, 80
    %v1520 = vpop.permute.xlu0 %1519
    %1523 = vrot.lane.b32.xlu0 %v1436, 96
    %v1524 = vpop.permute.xlu0 %1523
    %1527 = vrot.lane.b32.xlu0 %v1459, 112
    %v1528 = vpop.permute.xlu0 %1527
    %v1530 = vsel %vm531, %v1298, %v1504
    %v1531 = vsel %vm1490, %v1530, %v1508
    %v1532 = vsel %vm1492, %v1531, %v1512
    %v1533 = vsel %vm1494, %v1532, %v1516
    %v1534 = vsel %vm1496, %v1533, %v1520
    %v1535 = vsel %vm1498, %v1534, %v1524
    %v1536 = vsel %vm1500, %v1535, %v1528
    %1537 = vadd.xlane.f32.xlu0 %v1501
    %v1538 = vpop.xlane.xlu0 %1537
    %1539 = vadd.xlane.f32.xlu0 %v1536
    %v1540 = vpop.xlane.xlu0 %1539
    %v1541 = vrcp.pop 128.0
    %v1542 = vmul.f32 128.0, %v1541
    %v1543 = vsub.f32 1.0, %v1542
    %v1544 = vmul.f32 %v1541, %v1543
    %v1545 = vadd.f32 %v1541, %v1544
    %vm1546 = vweird.f32 %v1541
    %v1547 = vsel %vm1546, %v1541, %v1545
    %v1548 = vmul.f32 %v1538, %v1547
    %v1549 = vmul.f32 %v1540, %v1547
    %v1550 = vsub.f32 %v1501, %v1548
    %v1551 = vsub.f32 %v1536, %v1549
    %v1552 = vmul.f32 %v1550, %v1550
    %v1553 = vmul.f32 %v1551, %v1551
    %1554 = vadd.xlane.f32.xlu0 %v1552
    %v1555 = vpop.xlane.xlu0 %1554
    %1556 = vadd.xlane.f32.xlu0 %v1553
    %v1557 = vpop.xlane.xlu0 %1556
    %v1558 = vmul.f32 %v1555, 0.007874016
    %v1559 = vmul.f32 %v1557, 0.007874016
    %v1560 = vrsqrt.pop %v1558
    %v1561 = vmul.f32 %v1560, %v1558
    %v1562 = vmul.f32 %v1561, %v1560
    %v1563 = vmul.f32 0.5, %v1562
    %v1564 = vsub.f32 1.5, %v1563
    %v1565 = vmul.f32 %v1560, %v1564
    %vm1566 = vweird.f32 %v1558
    %vm1567 = vweird.f32 %v1560
    %vm1568 = vmor %vm1566, %vm1567
    %v1569 = vsel %vm1568, %v1560, %v1565
    %v1570 = vrsqrt.pop %v1559
    %v1571 = vmul.f32 %v1570, %v1559
    %v1572 = vmul.f32 %v1571, %v1570
    %v1573 = vmul.f32 0.5, %v1572
    %v1574 = vsub.f32 1.5, %v1573
    %v1575 = vmul.f32 %v1570, %v1574
    %vm1576 = vweird.f32 %v1559
    %vm1577 = vweird.f32 %v1570
    %vm1578 = vmor %vm1576, %vm1577
    %v1579 = vsel %vm1578, %v1570, %v1575
    %v1580 = vmul.f32 %v1550, %v1569
    %v1581 = vmul.f32 %v1551, %v1579
    %v1582 = vadd.f32 %v170, %v1580
    %v1583 = vadd.f32 %v171, %v1581
    %v1584 = vpack.c.bf16 %v1583, %v1582
    %v1585 = vld [vmem:[#allocation13] sm:$0xff]
    %v1586 = vld [vmem:[#allocation13 + $0x8] sm:$0xff]
    %v1587 = vld [vmem:[#allocation13 + $0x10] sm:$0xff]
    %v1588 = vld [vmem:[#allocation13 + $0x18] sm:$0xff]
    %v1589 = vld [vmem:[#allocation13 + $0x20] sm:$0xff]
    %v1590 = vld [vmem:[#allocation13 + $0x28] sm:$0xff]
    %v1591 = vld [vmem:[#allocation13 + $0x30] sm:$0xff]
    %v1592 = vld [vmem:[#allocation13 + $0x38] sm:$0xff]
    %v1593 = vld [vmem:[#allocation13 + $0x40] sm:$0xff]
    %v1594 = vld [vmem:[#allocation13 + $0x48] sm:$0xff]
    %v1595 = vld [vmem:[#allocation13 + $0x50] sm:$0xff]
    %v1596 = vld [vmem:[#allocation13 + $0x58] sm:$0xff]
    %v1597 = vld [vmem:[#allocation13 + $0x60] sm:$0xff]
    %v1598 = vld [vmem:[#allocation13 + $0x68] sm:$0xff]
    %v1599 = vld [vmem:[#allocation13 + $0x70] sm:$0xff]
    %v1600 = vld [vmem:[#allocation13 + $0x78] sm:$0xff]
    %v1601 = vld [vmem:[#allocation13 + $0x80] sm:$0xff]
    %v1602 = vld [vmem:[#allocation13 + $0x88] sm:$0xff]
    %v1603 = vld [vmem:[#allocation13 + $0x90] sm:$0xff]
    %v1604 = vld [vmem:[#allocation13 + $0x98] sm:$0xff]
    %v1605 = vld [vmem:[#allocation13 + $0xa0] sm:$0xff]
    %v1606 = vld [vmem:[#allocation13 + $0xa8] sm:$0xff]
    %v1607 = vld [vmem:[#allocation13 + $0xb0] sm:$0xff]
    %v1608 = vld [vmem:[#allocation13 + $0xb8] sm:$0xff]
    %v1609 = vld [vmem:[#allocation13 + $0xc0] sm:$0xff]
    %v1610 = vld [vmem:[#allocation13 + $0xc8] sm:$0xff]
    %v1611 = vld [vmem:[#allocation13 + $0xd0] sm:$0xff]
    %v1612 = vld [vmem:[#allocation13 + $0xd8] sm:$0xff]
    %v1613 = vld [vmem:[#allocation13 + $0xe0] sm:$0xff]
    %v1614 = vld [vmem:[#allocation13 + $0xe8] sm:$0xff]
    %v1615 = vld [vmem:[#allocation13 + $0xf0] sm:$0xff]
    %v1616 = vld [vmem:[#allocation13 + $0xf8] sm:$0xff]
    %v1617 = vld [vmem:[%s10] sm:$0xf]
    %v1619 = vperm.slane %v1617, 0
    %v1620 = vperm.slane %v1617, 1
    %v1621 = vperm.slane %v1617, 2
    %v1622 = vperm.slane %v1617, 3
    %v1659 = vunpack.c.l.b16 %v1585
    %v1660 = vunpack.c.h.b16 %v1585
    %v1661 = vunpack.c.l.b16 %v1586
    %v1662 = vunpack.c.h.b16 %v1586
    %v1663 = vunpack.c.l.b16 %v1587
    %v1664 = vunpack.c.h.b16 %v1587
    %v1665 = vunpack.c.l.b16 %v1588
    %v1666 = vunpack.c.h.b16 %v1588
    %v1667 = vunpack.c.l.b16 %v1589
    %v1668 = vunpack.c.h.b16 %v1589
    %v1669 = vunpack.c.l.b16 %v1590
    %v1670 = vunpack.c.h.b16 %v1590
    %v1671 = vunpack.c.l.b16 %v1591
    %v1672 = vunpack.c.h.b16 %v1591
    %v1673 = vunpack.c.l.b16 %v1592
    %v1674 = vunpack.c.h.b16 %v1592
    %v1675 = vunpack.c.l.b16 %v1593
    %v1676 = vunpack.c.h.b16 %v1593
    %v1677 = vunpack.c.l.b16 %v1594
    %v1678 = vunpack.c.h.b16 %v1594
    %v1679 = vunpack.c.l.b16 %v1595
    %v1680 = vunpack.c.h.b16 %v1595
    %v1681 = vunpack.c.l.b16 %v1596
    %v1682 = vunpack.c.h.b16 %v1596
    %v1683 = vunpack.c.l.b16 %v1597
    %v1684 = vunpack.c.h.b16 %v1597
    %v1685 = vunpack.c.l.b16 %v1598
    %v1686 = vunpack.c.h.b16 %v1598
    %v1687 = vunpack.c.l.b16 %v1599
    %v1688 = vunpack.c.h.b16 %v1599
    %v1689 = vunpack.c.l.b16 %v1600
    %v1690 = vunpack.c.h.b16 %v1600
    %v1691 = vunpack.c.l.b16 %v1601
    %v1692 = vunpack.c.h.b16 %v1601
    %v1693 = vunpack.c.l.b16 %v1602
    %v1694 = vunpack.c.h.b16 %v1602
    %v1695 = vunpack.c.l.b16 %v1603
    %v1696 = vunpack.c.h.b16 %v1603
    %v1697 = vunpack.c.l.b16 %v1604
    %v1698 = vunpack.c.h.b16 %v1604
    %v1699 = vunpack.c.l.b16 %v1605
    %v1700 = vunpack.c.h.b16 %v1605
    %v1701 = vunpack.c.l.b16 %v1606
    %v1702 = vunpack.c.h.b16 %v1606
    %v1703 = vunpack.c.l.b16 %v1607
    %v1704 = vunpack.c.h.b16 %v1607
    %v1705 = vunpack.c.l.b16 %v1608
    %v1706 = vunpack.c.h.b16 %v1608
    %v1707 = vunpack.c.l.b16 %v1609
    %v1708 = vunpack.c.h.b16 %v1609
    %v1709 = vunpack.c.l.b16 %v1610
    %v1710 = vunpack.c.h.b16 %v1610
    %v1711 = vunpack.c.l.b16 %v1611
    %v1712 = vunpack.c.h.b16 %v1611
    %v1713 = vunpack.c.l.b16 %v1612
    %v1714 = vunpack.c.h.b16 %v1612
    %v1715 = vunpack.c.l.b16 %v1613
    %v1716 = vunpack.c.h.b16 %v1613
    %v1717 = vunpack.c.l.b16 %v1614
    %v1718 = vunpack.c.h.b16 %v1614
    %v1719 = vunpack.c.l.b16 %v1615
    %v1720 = vunpack.c.h.b16 %v1615
    %v1721 = vunpack.c.l.b16 %v1616
    %v1722 = vunpack.c.h.b16 %v1616
    %v1723 = vpack.c.b16 %v1663, %v1659
    %v1724 = vpack.c.b16 %v1664, %v1660
    %v1725 = vpack.c.b16 %v1665, %v1661
    %v1726 = vpack.c.b16 %v1666, %v1662
    %v1727 = vpack.c.b16 %v1671, %v1667
    %v1728 = vpack.c.b16 %v1672, %v1668
    %v1729 = vpack.c.b16 %v1673, %v1669
    %v1730 = vpack.c.b16 %v1674, %v1670
    %v1731 = vpack.c.b16 %v1679, %v1675
    %v1732 = vpack.c.b16 %v1680, %v1676
    %v1733 = vpack.c.b16 %v1681, %v1677
    %v1734 = vpack.c.b16 %v1682, %v1678
    %v1735 = vpack.c.b16 %v1687, %v1683
    %v1736 = vpack.c.b16 %v1688, %v1684
    %v1737 = vpack.c.b16 %v1689, %v1685
    %v1738 = vpack.c.b16 %v1690, %v1686
    %v1739 = vpack.c.b16 %v1695, %v1691
    %v1740 = vpack.c.b16 %v1696, %v1692
    %v1741 = vpack.c.b16 %v1697, %v1693
    %v1742 = vpack.c.b16 %v1698, %v1694
    %v1743 = vpack.c.b16 %v1703, %v1699
    %v1744 = vpack.c.b16 %v1704, %v1700
    %v1745 = vpack.c.b16 %v1705, %v1701
    %v1746 = vpack.c.b16 %v1706, %v1702
    %v1747 = vpack.c.b16 %v1711, %v1707
    %v1748 = vpack.c.b16 %v1712, %v1708
    %v1749 = vpack.c.b16 %v1713, %v1709
    %v1750 = vpack.c.b16 %v1714, %v1710
    %v1751 = vpack.c.b16 %v1719, %v1715
    %v1752 = vpack.c.b16 %v1720, %v1716
    %v1753 = vpack.c.b16 %v1721, %v1717
    %v1754 = vpack.c.b16 %v1722, %v1718
    %1787 = vmatpush.bf16.msra.mxu0 %v1751
    %1788 = vmatpush.bf16.msra.mxu0 %v1747
    %1789 = vmatpush.bf16.msra.mxu0 %v1743
    %1790 = vmatpush.bf16.msra.mxu0 %v1739
    %1791 = vmatpush.bf16.msra.mxu0 %v1735
    %1792 = vmatpush.bf16.msra.mxu0 %v1731
    %1793 = vmatpush.bf16.msra.mxu0 %v1727
    %1794 = vmatpush.bf16.msra.mxu0 %v1723
    %1795 = vmatmul.bf16.gmra.mxu0 %v1584
    %v1796 = vpop.f32.mrf.mxu0
    %v1797 = vadd.f32 %v1619, %v1796
    %v1798 = vpop.f32.mrf.mxu0
    %v1799 = vadd.f32 %v1619, %v1798
    %1800 = vdwg.mxu0
    %1801 = vmatpush.bf16.msra.mxu0 %v1752
    %1802 = vmatpush.bf16.msra.mxu0 %v1748
    %1803 = vmatpush.bf16.msra.mxu0 %v1744
    %1804 = vmatpush.bf16.msra.mxu0 %v1740
    %1805 = vmatpush.bf16.msra.mxu0 %v1736
    %1806 = vmatpush.bf16.msra.mxu0 %v1732
    %1807 = vmatpush.bf16.msra.mxu0 %v1728
    %1808 = vmatpush.bf16.msra.mxu0 %v1724
    %1809 = vmatmul.bf16.gmra.mxu0 %v1584
    %v1810 = vpop.f32.mrf.mxu0
    %v1811 = vadd.f32 %v1620, %v1810
    %v1812 = vpop.f32.mrf.mxu0
    %v1813 = vadd.f32 %v1620, %v1812
    %1814 = vdwg.mxu0
    %1815 = vmatpush.bf16.msra.mxu0 %v1753
    %1816 = vmatpush.bf16.msra.mxu0 %v1749
    %1817 = vmatpush.bf16.msra.mxu0 %v1745
    %1818 = vmatpush.bf16.msra.mxu0 %v1741
    %1819 = vmatpush.bf16.msra.mxu0 %v1737
    %1820 = vmatpush.bf16.msra.mxu0 %v1733
    %1821 = vmatpush.bf16.msra.mxu0 %v1729
    %1822 = vmatpush.bf16.msra.mxu0 %v1725
    %1823 = vmatmul.bf16.gmra.mxu0 %v1584
    %v1824 = vpop.f32.mrf.mxu0
    %v1825 = vadd.f32 %v1621, %v1824
    %v1826 = vpop.f32.mrf.mxu0
    %v1827 = vadd.f32 %v1621, %v1826
    %1828 = vdwg.mxu0
    %1829 = vmatpush.bf16.msra.mxu0 %v1754
    %1830 = vmatpush.bf16.msra.mxu0 %v1750
    %1831 = vmatpush.bf16.msra.mxu0 %v1746
    %1832 = vmatpush.bf16.msra.mxu0 %v1742
    %1833 = vmatpush.bf16.msra.mxu0 %v1738
    %1834 = vmatpush.bf16.msra.mxu0 %v1734
    %1835 = vmatpush.bf16.msra.mxu0 %v1730
    %1836 = vmatpush.bf16.msra.mxu0 %v1726
    %1837 = vmatmul.bf16.gmra.mxu0 %v1584
    %v1838 = vpop.f32.mrf.mxu0
    %v1839 = vadd.f32 %v1622, %v1838
    %v1840 = vpop.f32.mrf.mxu0
    %v1841 = vadd.f32 %v1622, %v1840
    %1842 = vdwg.mxu0
    %v1843 = vmax.f32 %v1797, 0.0
    %v1844 = vmax.f32 %v1811, 0.0
    %v1845 = vmax.f32 %v1825, 0.0
    %v1846 = vmax.f32 %v1839, 0.0
    %v1847 = vmax.f32 %v1799, 0.0
    %v1848 = vmax.f32 %v1813, 0.0
    %v1849 = vmax.f32 %v1827, 0.0
    %v1850 = vmax.f32 %v1841, 0.0
    %v1851 = vpack.c.bf16 %v1847, %v1843
    %v1852 = vpack.c.bf16 %v1848, %v1844
    %v1853 = vpack.c.bf16 %v1849, %v1845
    %v1854 = vpack.c.bf16 %v1850, %v1846
    %v1855 = vld [vmem:[#allocation14] sm:$0xf]
    %v1856 = vld [vmem:[#allocation14 + $0x4] sm:$0xf]
    %v1857 = vld [vmem:[#allocation14 + $0x8] sm:$0xf]
    %v1858 = vld [vmem:[#allocation14 + $0xc] sm:$0xf]
    %v1859 = vld [vmem:[#allocation14 + $0x10] sm:$0xf]
    %v1860 = vld [vmem:[#allocation14 + $0x14] sm:$0xf]
    %v1861 = vld [vmem:[#allocation14 + $0x18] sm:$0xf]
    %v1862 = vld [vmem:[#allocation14 + $0x1c] sm:$0xf]
    %v1863 = vld [vmem:[#allocation14 + $0x20] sm:$0xf]
    %v1864 = vld [vmem:[#allocation14 + $0x24] sm:$0xf]
    %v1865 = vld [vmem:[#allocation14 + $0x28] sm:$0xf]
    %v1866 = vld [vmem:[#allocation14 + $0x2c] sm:$0xf]
    %v1867 = vld [vmem:[#allocation14 + $0x30] sm:$0xf]
    %v1868 = vld [vmem:[#allocation14 + $0x34] sm:$0xf]
    %v1869 = vld [vmem:[#allocation14 + $0x38] sm:$0xf]
    %v1870 = vld [vmem:[#allocation14 + $0x3c] sm:$0xf]
    %v1871 = vld [vmem:[#allocation14 + $0x40] sm:$0xf]
    %v1872 = vld [vmem:[#allocation14 + $0x44] sm:$0xf]
    %v1873 = vld [vmem:[#allocation14 + $0x48] sm:$0xf]
    %v1874 = vld [vmem:[#allocation14 + $0x4c] sm:$0xf]
    %v1875 = vld [vmem:[#allocation14 + $0x50] sm:$0xf]
    %v1876 = vld [vmem:[#allocation14 + $0x54] sm:$0xf]
    %v1877 = vld [vmem:[#allocation14 + $0x58] sm:$0xf]
    %v1878 = vld [vmem:[#allocation14 + $0x5c] sm:$0xf]
    %v1879 = vld [vmem:[#allocation14 + $0x60] sm:$0xf]
    %v1880 = vld [vmem:[#allocation14 + $0x64] sm:$0xf]
    %v1881 = vld [vmem:[#allocation14 + $0x68] sm:$0xf]
    %v1882 = vld [vmem:[#allocation14 + $0x6c] sm:$0xf]
    %v1883 = vld [vmem:[#allocation14 + $0x70] sm:$0xf]
    %v1884 = vld [vmem:[#allocation14 + $0x74] sm:$0xf]
    %v1885 = vld [vmem:[#allocation14 + $0x78] sm:$0xf]
    %v1886 = vld [vmem:[#allocation14 + $0x7c] sm:$0xf]
    %v1887 = vld [vmem:[#allocation14 + $0x80] sm:$0xf]
    %v1888 = vld [vmem:[#allocation14 + $0x84] sm:$0xf]
    %v1889 = vld [vmem:[#allocation14 + $0x88] sm:$0xf]
    %v1890 = vld [vmem:[#allocation14 + $0x8c] sm:$0xf]
    %v1891 = vld [vmem:[#allocation14 + $0x90] sm:$0xf]
    %v1892 = vld [vmem:[#allocation14 + $0x94] sm:$0xf]
    %v1893 = vld [vmem:[#allocation14 + $0x98] sm:$0xf]
    %v1894 = vld [vmem:[#allocation14 + $0x9c] sm:$0xf]
    %v1895 = vld [vmem:[#allocation14 + $0xa0] sm:$0xf]
    %v1896 = vld [vmem:[#allocation14 + $0xa4] sm:$0xf]
    %v1897 = vld [vmem:[#allocation14 + $0xa8] sm:$0xf]
    %v1898 = vld [vmem:[#allocation14 + $0xac] sm:$0xf]
    %v1899 = vld [vmem:[#allocation14 + $0xb0] sm:$0xf]
    %v1900 = vld [vmem:[#allocation14 + $0xb4] sm:$0xf]
    %v1901 = vld [vmem:[#allocation14 + $0xb8] sm:$0xf]
    %v1902 = vld [vmem:[#allocation14 + $0xbc] sm:$0xf]
    %v1903 = vld [vmem:[#allocation14 + $0xc0] sm:$0xf]
    %v1904 = vld [vmem:[#allocation14 + $0xc4] sm:$0xf]
    %v1905 = vld [vmem:[#allocation14 + $0xc8] sm:$0xf]
    %v1906 = vld [vmem:[#allocation14 + $0xcc] sm:$0xf]
    %v1907 = vld [vmem:[#allocation14 + $0xd0] sm:$0xf]
    %v1908 = vld [vmem:[#allocation14 + $0xd4] sm:$0xf]
    %v1909 = vld [vmem:[#allocation14 + $0xd8] sm:$0xf]
    %v1910 = vld [vmem:[#allocation14 + $0xdc] sm:$0xf]
    %v1911 = vld [vmem:[#allocation14 + $0xe0] sm:$0xf]
    %v1912 = vld [vmem:[#allocation14 + $0xe4] sm:$0xf]
    %v1913 = vld [vmem:[#allocation14 + $0xe8] sm:$0xf]
    %v1914 = vld [vmem:[#allocation14 + $0xec] sm:$0xf]
    %v1915 = vld [vmem:[#allocation14 + $0xf0] sm:$0xf]
    %v1916 = vld [vmem:[#allocation14 + $0xf4] sm:$0xf]
    %v1917 = vld [vmem:[#allocation14 + $0xf8] sm:$0xf]
    %v1918 = vld [vmem:[#allocation14 + $0xfc] sm:$0xf]
    %v1919 = vld [vmem:[%s12] sm:$0x1]
    %v1921 = vperm.slane %v1919, 0
    %v1987 = vunpack.c.l.b16 %v1855
    %v1988 = vunpack.c.l.b16 %v1856
    %v1989 = vunpack.c.l.b16 %v1857
    %v1990 = vunpack.c.l.b16 %v1858
    %v1991 = vunpack.c.l.b16 %v1859
    %v1992 = vunpack.c.l.b16 %v1860
    %v1993 = vunpack.c.l.b16 %v1861
    %v1994 = vunpack.c.l.b16 %v1862
    %v1995 = vunpack.c.l.b16 %v1863
    %v1996 = vunpack.c.l.b16 %v1864
    %v1997 = vunpack.c.l.b16 %v1865
    %v1998 = vunpack.c.l.b16 %v1866
    %v1999 = vunpack.c.l.b16 %v1867
    %v2000 = vunpack.c.l.b16 %v1868
    %v2001 = vunpack.c.l.b16 %v1869
    %v2002 = vunpack.c.l.b16 %v1870
    %v2003 = vunpack.c.l.b16 %v1871
    %v2004 = vunpack.c.l.b16 %v1872
    %v2005 = vunpack.c.l.b16 %v1873
    %v2006 = vunpack.c.l.b16 %v1874
    %v2007 = vunpack.c.l.b16 %v1875
    %v2008 = vunpack.c.l.b16 %v1876
    %v2009 = vunpack.c.l.b16 %v1877
    %v2010 = vunpack.c.l.b16 %v1878
    %v2011 = vunpack.c.l.b16 %v1879
    %v2012 = vunpack.c.l.b16 %v1880
    %v2013 = vunpack.c.l.b16 %v1881
    %v2014 = vunpack.c.l.b16 %v1882
    %v2015 = vunpack.c.l.b16 %v1883
    %v2016 = vunpack.c.l.b16 %v1884
    %v2017 = vunpack.c.l.b16 %v1885
    %v2018 = vunpack.c.l.b16 %v1886
    %v2019 = vunpack.c.l.b16 %v1887
    %v2020 = vunpack.c.l.b16 %v1888
    %v2021 = vunpack.c.l.b16 %v1889
    %v2022 = vunpack.c.l.b16 %v1890
    %v2023 = vunpack.c.l.b16 %v1891
    %v2024 = vunpack.c.l.b16 %v1892
    %v2025 = vunpack.c.l.b16 %v1893
    %v2026 = vunpack.c.l.b16 %v1894
    %v2027 = vunpack.c.l.b16 %v1895
    %v2028 = vunpack.c.l.b16 %v1896
    %v2029 = vunpack.c.l.b16 %v1897
    %v2030 = vunpack.c.l.b16 %v1898
    %v2031 = vunpack.c.l.b16 %v1899
    %v2032 = vunpack.c.l.b16 %v1900
    %v2033 = vunpack.c.l.b16 %v1901
    %v2034 = vunpack.c.l.b16 %v1902
    %v2035 = vunpack.c.l.b16 %v1903
    %v2036 = vunpack.c.l.b16 %v1904
    %v2037 = vunpack.c.l.b16 %v1905
    %v2038 = vunpack.c.l.b16 %v1906
    %v2039 = vunpack.c.l.b16 %v1907
    %v2040 = vunpack.c.l.b16 %v1908
    %v2041 = vunpack.c.l.b16 %v1909
    %v2042 = vunpack.c.l.b16 %v1910
    %v2043 = vunpack.c.l.b16 %v1911
    %v2044 = vunpack.c.l.b16 %v1912
    %v2045 = vunpack.c.l.b16 %v1913
    %v2046 = vunpack.c.l.b16 %v1914
    %v2047 = vunpack.c.l.b16 %v1915
    %v2048 = vunpack.c.l.b16 %v1916
    %v2049 = vunpack.c.l.b16 %v1917
    %v2050 = vunpack.c.l.b16 %v1918
    %v2051 = vpack.c.b16 %v1988, %v1987
    %v2052 = vpack.c.b16 %v1990, %v1989
    %v2053 = vpack.c.b16 %v1992, %v1991
    %v2054 = vpack.c.b16 %v1994, %v1993
    %v2055 = vpack.c.b16 %v1996, %v1995
    %v2056 = vpack.c.b16 %v1998, %v1997
    %v2057 = vpack.c.b16 %v2000, %v1999
    %v2058 = vpack.c.b16 %v2002, %v2001
    %v2059 = vpack.c.b16 %v2004, %v2003
    %v2060 = vpack.c.b16 %v2006, %v2005
    %v2061 = vpack.c.b16 %v2008, %v2007
    %v2062 = vpack.c.b16 %v2010, %v2009
    %v2063 = vpack.c.b16 %v2012, %v2011
    %v2064 = vpack.c.b16 %v2014, %v2013
    %v2065 = vpack.c.b16 %v2016, %v2015
    %v2066 = vpack.c.b16 %v2018, %v2017
    %v2067 = vpack.c.b16 %v2020, %v2019
    %v2068 = vpack.c.b16 %v2022, %v2021
    %v2069 = vpack.c.b16 %v2024, %v2023
    %v2070 = vpack.c.b16 %v2026, %v2025
    %v2071 = vpack.c.b16 %v2028, %v2027
    %v2072 = vpack.c.b16 %v2030, %v2029
    %v2073 = vpack.c.b16 %v2032, %v2031
    %v2074 = vpack.c.b16 %v2034, %v2033
    %v2075 = vpack.c.b16 %v2036, %v2035
    %v2076 = vpack.c.b16 %v2038, %v2037
    %v2077 = vpack.c.b16 %v2040, %v2039
    %v2078 = vpack.c.b16 %v2042, %v2041
    %v2079 = vpack.c.b16 %v2044, %v2043
    %v2080 = vpack.c.b16 %v2046, %v2045
    %v2081 = vpack.c.b16 %v2048, %v2047
    %v2082 = vpack.c.b16 %v2050, %v2049
    %2115 = vmatpush.bf16.msra.mxu0 %v2058
    %2116 = vmatpush.bf16.msra.mxu0 %v2057
    %2117 = vmatpush.bf16.msra.mxu0 %v2056
    %2118 = vmatpush.bf16.msra.mxu0 %v2055
    %2119 = vmatpush.bf16.msra.mxu0 %v2054
    %2120 = vmatpush.bf16.msra.mxu0 %v2053
    %2121 = vmatpush.bf16.msra.mxu0 %v2052
    %2122 = vmatpush.bf16.msra.mxu0 %v2051
    %2123 = vmatmul.bf16.gmra.mxu0 %v1851
    %v2124 = vpop.f32.mrf.mxu0
    %v2125 = vadd.f32 %v1921, %v2124
    %v2126 = vpop.f32.mrf.mxu0
    %v2127 = vadd.f32 %v1921, %v2126
    %2128 = vdwg.mxu0
    %2129 = vmatpush.bf16.msra.mxu0 %v2066
    %2130 = vmatpush.bf16.msra.mxu0 %v2065
    %2131 = vmatpush.bf16.msra.mxu0 %v2064
    %2132 = vmatpush.bf16.msra.mxu0 %v2063
    %2133 = vmatpush.bf16.msra.mxu0 %v2062
    %2134 = vmatpush.bf16.msra.mxu0 %v2061
    %2135 = vmatpush.bf16.msra.mxu0 %v2060
    %2136 = vmatpush.bf16.msra.mxu0 %v2059
    %2137 = vmatmul.bf16.gmra.mxu0 %v1852
    %v2138 = vpop.f32.mrf.mxu0
    %v2139 = vadd.f32 %v2125, %v2138
    %v2140 = vpop.f32.mrf.mxu0
    %v2141 = vadd.f32 %v2127, %v2140
    %2142 = vdwg.mxu0
    %2143 = vmatpush.bf16.msra.mxu0 %v2074
    %2144 = vmatpush.bf16.msra.mxu0 %v2073
    %2145 = vmatpush.bf16.msra.mxu0 %v2072
    %2146 = vmatpush.bf16.msra.mxu0 %v2071
    %2147 = vmatpush.bf16.msra.mxu0 %v2070
    %2148 = vmatpush.bf16.msra.mxu0 %v2069
    %2149 = vmatpush.bf16.msra.mxu0 %v2068
    %2150 = vmatpush.bf16.msra.mxu0 %v2067
    %2151 = vmatmul.bf16.gmra.mxu0 %v1853
    %v2152 = vpop.f32.mrf.mxu0
    %v2153 = vadd.f32 %v2139, %v2152
    %v2154 = vpop.f32.mrf.mxu0
    %v2155 = vadd.f32 %v2141, %v2154
    %2156 = vdwg.mxu0
    %2157 = vmatpush.bf16.msra.mxu0 %v2082
    %2158 = vmatpush.bf16.msra.mxu0 %v2081
    %2159 = vmatpush.bf16.msra.mxu0 %v2080
    %2160 = vmatpush.bf16.msra.mxu0 %v2079
    %2161 = vmatpush.bf16.msra.mxu0 %v2078
    %2162 = vmatpush.bf16.msra.mxu0 %v2077
    %2163 = vmatpush.bf16.msra.mxu0 %v2076
    %2164 = vmatpush.bf16.msra.mxu0 %v2075
    %2165 = vmatmul.bf16.gmra.mxu0 %v1854
    %v2166 = vpop.f32.mrf.mxu0
    %v2167 = vadd.f32 %v2153, %v2166
    %v2168 = vpop.f32.mrf.mxu0
    %v2169 = vadd.f32 %v2155, %v2168
    %2170 = vdwg.mxu0
    %2171 = vadd.xlane.f32.xlu0 %v2167
    %v2172 = vpop.xlane.xlu0 %2171
    %2173 = vadd.xlane.f32.xlu0 %v2169
    %v2174 = vpop.xlane.xlu0 %2173
    %v2175 = vmul.f32 %v2172, %v1547
    %v2176 = vmul.f32 %v2174, %v1547
    %v2177 = vsub.f32 %v2167, %v2175
    %v2178 = vsub.f32 %v2169, %v2176
    %v2179 = vmul.f32 %v2177, %v2177
    %v2180 = vmul.f32 %v2178, %v2178
    %2181 = vadd.xlane.f32.xlu0 %v2179
    %v2182 = vpop.xlane.xlu0 %2181
    %2183 = vadd.xlane.f32.xlu0 %v2180
    %v2184 = vpop.xlane.xlu0 %2183
    %v2185 = vmul.f32 %v2182, 0.007874016
    %v2186 = vmul.f32 %v2184, 0.007874016
    %v2187 = vrsqrt.pop %v2185
    %v2188 = vmul.f32 %v2187, %v2185
    %v2189 = vmul.f32 %v2188, %v2187
    %v2190 = vmul.f32 0.5, %v2189
    %v2191 = vsub.f32 1.5, %v2190
    %v2192 = vmul.f32 %v2187, %v2191
    %vm2193 = vweird.f32 %v2185
    %vm2194 = vweird.f32 %v2187
    %vm2195 = vmor %vm2193, %vm2194
    %v2196 = vsel %vm2195, %v2187, %v2192
    %v2197 = vrsqrt.pop %v2186
    %v2198 = vmul.f32 %v2197, %v2186
    %v2199 = vmul.f32 %v2198, %v2197
    %v2200 = vmul.f32 0.5, %v2199
    %v2201 = vsub.f32 1.5, %v2200
    %v2202 = vmul.f32 %v2197, %v2201
    %vm2203 = vweird.f32 %v2186
    %vm2204 = vweird.f32 %v2197
    %vm2205 = vmor %vm2203, %vm2204
    %v2206 = vsel %vm2205, %v2197, %v2202
    %v2207 = vmul.f32 %v2177, %v2196
    %v2208 = vmul.f32 %v2178, %v2206
    %v2209 = vadd.f32 %v1582, %v2207
    %v2210 = vadd.f32 %v1583, %v2208
    %2211 = vst [vmem:[#allocation16] sm:$0xff] %v2209
    %2212 = vst [vmem:[#allocation16 + $0x8] sm:$0xff] %v2210
    // Predicated region
    $region86: #{tpu_custom_call.1} parent=1 // pred_check
      _
    $region87: #{tpu_custom_call.1} parent=1 // pred_check_branch
      %2214 = sbr.rel (0) target = $region89
    $region88: #{tpu_custom_call.1} parent=1 // pred_region
      %2216 = vsyncadd [#allocation4], 0
      %s2217 = sshll.u32 [#allocation16], 4
      %s2218 = int_to_ptr.vmem [resolvable:$true] %s2217
      %s2219 = sshll.u32 %s13, 4
      %s2220 = int_to_ptr.hbm [resolvable:$true] %s2219
      %2225 = dma.vmem_to_hbm [thread:$0]  %s2218, 256, %s2220, [#allocation4], 128, 128, 8
    $region89: #{tpu_custom_call.1} parent=1 // pred_fallthru
      _
    // Predicated region
    $region90: #{tpu_custom_call.1} parent=1 // pred_check
      _
    $region91: #{tpu_custom_call.1} parent=1 // pred_check_branch
      %2227 = sbr.rel (0) target = $region93
    $region92: #{tpu_custom_call.1} parent=1 // pred_region
      %2229 = dma.done [#allocation4], 256
    $region93: #{tpu_custom_call.1} parent=1 // pred_fallthru
      _
    %2230 = vsyncpa [#allocation3], 1
    %2231 = vsyncpa [#allocation6], 1
    %2232 = vsyncpa [#allocation9], 1
    %2233 = vsyncpa [#allocation12], 1
    %2234 = vsyncpa [#allocation15], 1
    %2235 = vsyncpa [#allocation4], 1

</llo_original>
